<compile_context>
chip_gen: v7x
topology: tpu7x:2x2x1
jax: 0.10.0
libtpu: 0.0.40
codegen_flags: <defaults>
</compile_context>

<pallas_src>
import math

import jax
import jax.numpy as jnp
from jax.experimental import pallas as pl
from jax.experimental.pallas import tpu as pltpu


def gcn_kernel(x_ref, adj_ref, w1_ref, b1_ref, w2_ref, b2_ref, out_ref):
    bb, n, _ = x_ref.shape

    x = x_ref[...]        # (BB, N, nfeat) f32
    adj = adj_ref[...]    # (BB, N, N)     f32

    inv_n = jnp.float32(1.0 / n)

    # m[b, j] = (1/N) * sum_i adj[b, i, j]   (column means = mean of adj rows)
    m = jnp.sum(adj, axis=1) * inv_n                       # (BB, N)   XLU sublane reduce

    # a2 = m @ adj per graph, on the VPU (N is tiny) instead of BB tiny MXU matmuls.
    a2 = jnp.sum(m[:, :, None] * adj, axis=1)              # (BB, N)

    # z = a2 @ x per graph, likewise on the VPU.
    z = jnp.sum(a2[:, :, None] * x, axis=1)                # (BB, nfeat)

    # c = sum_j m[b, j]  (weight the layer-1 bias picks up through adj + pooling)
    c = jnp.sum(m, axis=1, keepdims=True)                  # (BB, 1)

    # TODO(synk): F.dropout is stochastic at train time; the fold above is only valid in
    # eval mode (dropout = identity). Training would need per-node h1 + a dropout mask.

    # Folded dense projections on the MXU: one (BB, nfeat)@(nfeat, nhid) and one
    # (BB, nhid)@(nhid, nout) matmul per grid step.
    h = jnp.dot(z, w1_ref[...], preferred_element_type=jnp.float32) + c * b1_ref[...]
    out = jnp.dot(h, w2_ref[...], preferred_element_type=jnp.float32) + b2_ref[...]

    out_ref[...] = out.astype(out_ref.dtype)


def _is_dual_core_chip():
    """Best-effort detection of a 2-TensorCore chip (v7x); falls back to single core."""
    try:
        kind = jax.devices()[0].device_kind.lower()
    except Exception:
        return False
    return "v7" in kind


def _choose_block_batch(B, N, nfeat, vmem_input_budget_bytes=8 << 20):
    """Pick BB (batch block) dividing B.

    Single-TC chips (v5e/v6e): 1 grid step (BB=B) -> no per-step overhead, biggest folded M.
    v7x (2 TCs): >=4 parallel steps so each core gets >=2 steps and can pipeline DMA.
    Also cap BB so the double-buffered adj/x blocks stay well under the scoped-VMEM limit.
    """
    target_steps = 4 if _is_dual_core_chip() else 1
    per_graph_bytes = 2 * (N * N + N * nfeat) * 4          # double-buffered adj + x, f32
    vmem_cap = max(1, vmem_input_budget_bytes // max(per_graph_bytes, 1))
    cap = min(B, vmem_cap, max(1, B // target_steps))
    for bb in range(cap, 0, -1):
        if B % bb == 0:
            return bb
    return 1


def gcn_forward(xs, adjs, w1, b1, w2, b2, *, block_batch=None):
    """Pallas GCN forward (eval semantics). All compute in f32."""
    B, N, nfeat = xs.shape
    nhid = w1.shape[1]
    nout = w2.shape[1]

    if block_batch is None:
        block_batch = _choose_block_batch(B, N, nfeat)
    assert B % block_batch == 0, "block_batch must divide B"
    BB = block_batch

    xs = xs.astype(jnp.float32)
    adjs = adjs.astype(jnp.float32)
    w1 = w1.astype(jnp.float32)
    w2 = w2.astype(jnp.float32)
    b1_2d = b1.reshape(1, nhid).astype(jnp.float32)
    b2_2d = b2.reshape(1, nout).astype(jnp.float32)

    # TODO(synk): for very large N (>= ~1024) the (BB, N, N) adj block should additionally be
    # row-tiled over an extra "arbitrary" grid axis (sized against v7x's 64 MiB VMEM / 32 MiB
    # default scoped limit); unnecessary at these shapes, where the VMEM cap above suffices.
    return pl.pallas_call(
        gcn_kernel,
        out_shape=jax.ShapeDtypeStruct((B, nout), jnp.float32),
        grid_spec=pltpu.PrefetchScalarGridSpec(
            num_scalar_prefetch=0,
            grid=(B // BB,),
            in_specs=[
                pl.BlockSpec((BB, N, nfeat), lambda i: (i, 0, 0)),
                pl.BlockSpec((BB, N, N), lambda i: (i, 0, 0)),
                pl.BlockSpec((nfeat, nhid), lambda i: (0, 0)),
                pl.BlockSpec((1, nhid), lambda i: (0, 0)),
                pl.BlockSpec((nhid, nout), lambda i: (0, 0)),
                pl.BlockSpec((1, nout), lambda i: (0, 0)),
            ],
            out_specs=pl.BlockSpec((BB, nout), lambda i: (i, 0)),
        ),
        compiler_params=pltpu.CompilerParams(
            dimension_semantics=("parallel",)),
    )(xs, adjs, w1, b1_2d, w2, b2_2d)


def init_gcn_params(key, nfeat, nhid, nout):
    """Deterministic init matching GraphConvolution.reset_parameters (uniform(-stdv, stdv))."""
    k1, k2, k3, k4 = jax.random.split(key, 4)
    stdv1 = 1.0 / math.sqrt(nhid)
    stdv2 = 1.0 / math.sqrt(nout)
    w1 = jax.random.uniform(k1, (nfeat, nhid), jnp.float32, -stdv1, stdv1)
    b1 = jax.random.uniform(k2, (nhid,), jnp.float32, -stdv1, stdv1)
    w2 = jax.random.uniform(k3, (nhid, nout), jnp.float32, -stdv2, stdv2)
    b2 = jax.random.uniform(k4, (nout,), jnp.float32, -stdv2, stdv2)
    return w1, b1, w2, b2


def gcn_reference(xs, adjs, w1, b1, w2, b2):
    """Pure-JAX reference of the PyTorch forward (eval mode)."""
    def one(x, adj):
        h1 = adj @ (x @ w1) + b1
        h2 = adj @ (h1 @ w2) + b2
        return jnp.mean(h2, axis=-2)
    return jax.vmap(one)(xs, adjs)


if __name__ == "__main__":
    # Small shapes consistent with the module: node_num=8, nfeat=16, nhid=32, nout=16, B=64.
    B, N, NFEAT, NHID, NOUT = 64, 8, 16, 32, 16

    key = jax.random.PRNGKey(0)
    kx, kadj, kparams = jax.random.split(key, 3)

    xs = jax.random.normal(kx, (B, N, NFEAT), dtype=jnp.float32)
    # symmetric, row-normalized adjacency with self loops (dense; torch.spmm on dense matches)
    raw = jax.random.uniform(kadj, (B, N, N), dtype=jnp.float32)
    adjs = (raw + jnp.swapaxes(raw, -1, -2)) * 0.5 + jnp.eye(N, dtype=jnp.float32)[None]
    adjs = adjs / jnp.sum(adjs, axis=-1, keepdims=True)

    w1, b1, w2, b2 = init_gcn_params(kparams, NFEAT, NHID, NOUT)

    ref = gcn_reference(xs, adjs, w1, b1, w2, b2)

    out = jax.block_until_ready(gcn_forward(xs, adjs, w1, b1, w2, b2))
    assert out.shape == (B, NOUT)
    # Reassociated fold changes summation order -> tolerance covers f32 rounding differences.
    assert jnp.allclose(out, ref, atol=1e-4, rtol=1e-4), "mismatch vs reference"

    # Also exercise an explicit multi-step grid (v7x-style blocking) for coverage.
    out_blocked = jax.block_until_ready(
        gcn_forward(xs, adjs, w1, b1, w2, b2, block_batch=16))
    assert jnp.allclose(out_blocked, ref, atol=1e-4, rtol=1e-4), "blocked mismatch vs reference"

    print("KERNEL_OK")
</pallas_src>

<mosaic_0001>
module attributes {stable_mosaic.version = 11 : i64} {
  func.func @gcn_kernel(%arg0: i32, %arg1: memref<64x8x16xf32, #tpu.memory_space<vmem>>, %arg2: memref<64x8x8xf32, #tpu.memory_space<vmem>>, %arg3: memref<16x32xf32, #tpu.memory_space<vmem>>, %arg4: memref<1x32xf32, #tpu.memory_space<vmem>>, %arg5: memref<32x16xf32, #tpu.memory_space<vmem>>, %arg6: memref<1x16xf32, #tpu.memory_space<vmem>>, %arg7: memref<64x16xf32, #tpu.memory_space<vmem>>) attributes {dimension_semantics = [#tpu.dimension_semantics<parallel>], iteration_bounds = array<i64: 1>, scalar_prefetch = 0 : i64, scratch_operands = 0 : i64, tpu.core_type = #tpu.core_type<tc>, window_params = [{transform_indices = @transform_0, window_bounds = array<i64: 64, 8, 16>}, {transform_indices = @transform_1, window_bounds = array<i64: 64, 8, 8>}, {pipeline_mode = #tpu.pipeline_mode<synchronous>, transform_indices = @transform_2, window_bounds = array<i64: 16, 32>}, {pipeline_mode = #tpu.pipeline_mode<synchronous>, transform_indices = @transform_3, window_bounds = array<i64: 1, 32>}, {pipeline_mode = #tpu.pipeline_mode<synchronous>, transform_indices = @transform_4, window_bounds = array<i64: 32, 16>}, {pipeline_mode = #tpu.pipeline_mode<synchronous>, transform_indices = @transform_5, window_bounds = array<i64: 1, 16>}, {transform_indices = @transform_6, window_bounds = array<i64: 64, 16>}]} {
    %c0 = arith.constant 0 : index
    %c0_0 = arith.constant 0 : index
    %c0_1 = arith.constant 0 : index
    %0 = vector.load %arg1[%c0, %c0_0, %c0_1] : memref<64x8x16xf32, #tpu.memory_space<vmem>>, vector<64x8x16xf32>
    %c0_2 = arith.constant 0 : index
    %c0_3 = arith.constant 0 : index
    %c0_4 = arith.constant 0 : index
    %1 = vector.load %arg2[%c0_2, %c0_3, %c0_4] : memref<64x8x8xf32, #tpu.memory_space<vmem>>, vector<64x8x8xf32>
    %cst = arith.constant dense<0.000000e+00> : vector<64x8xf32>
    %2 = vector.multi_reduction <add>, %1, %cst [1] : vector<64x8x8xf32> to vector<64x8xf32>
    %cst_5 = arith.constant 1.250000e-01 : f32
    %3 = vector.broadcast %cst_5 : f32 to vector<64x8xf32>
    %4 = arith.mulf %2, %3 : vector<64x8xf32>
    %5 = vector.shape_cast %4 : vector<64x8xf32> to vector<64x8x1xf32>
    %6 = vector.broadcast %5 : vector<64x8x1xf32> to vector<64x8x8xf32>
    %7 = arith.mulf %6, %1 : vector<64x8x8xf32>
    %cst_6 = arith.constant dense<0.000000e+00> : vector<64x8xf32>
    %8 = vector.multi_reduction <add>, %7, %cst_6 [1] : vector<64x8x8xf32> to vector<64x8xf32>
    %9 = vector.shape_cast %8 : vector<64x8xf32> to vector<64x8x1xf32>
    %10 = vector.broadcast %9 : vector<64x8x1xf32> to vector<64x8x16xf32>
    %11 = arith.mulf %10, %0 : vector<64x8x16xf32>
    %cst_7 = arith.constant dense<0.000000e+00> : vector<64x16xf32>
    %12 = vector.multi_reduction <add>, %11, %cst_7 [1] : vector<64x8x16xf32> to vector<64x16xf32>
    %cst_8 = arith.constant dense<0.000000e+00> : vector<64xf32>
    %13 = vector.multi_reduction <add>, %4, %cst_8 [1] : vector<64x8xf32> to vector<64xf32>
    %14 = vector.shape_cast %13 : vector<64xf32> to vector<64x1xf32>
    %c0_9 = arith.constant 0 : index
    %c0_10 = arith.constant 0 : index
    %15 = vector.load %arg3[%c0_9, %c0_10] : memref<16x32xf32, #tpu.memory_space<vmem>>, vector<16x32xf32>
    %cst_11 = arith.constant dense<0.000000e+00> : vector<64x32xf32>
    %16 = tpu.matmul %12, %15, %cst_11 {dimension_numbers = #tpu.dot_dimension_numbers<[1], [0], [0], [1], [0, 0, 1, 1], [], []>} : vector<64x16xf32>, vector<16x32xf32>, vector<64x32xf32> -> vector<64x32xf32>
    %c0_12 = arith.constant 0 : index
    %c0_13 = arith.constant 0 : index
    %17 = vector.load %arg4[%c0_12, %c0_13] : memref<1x32xf32, #tpu.memory_space<vmem>>, vector<1x32xf32>
    %18 = vector.broadcast %14 : vector<64x1xf32> to vector<64x32xf32>
    %19 = vector.broadcast %17 : vector<1x32xf32> to vector<64x32xf32>
    %20 = arith.mulf %18, %19 : vector<64x32xf32>
    %21 = arith.addf %16, %20 : vector<64x32xf32>
    %c0_14 = arith.constant 0 : index
    %c0_15 = arith.constant 0 : index
    %22 = vector.load %arg5[%c0_14, %c0_15] : memref<32x16xf32, #tpu.memory_space<vmem>>, vector<32x16xf32>
    %cst_16 = arith.constant dense<0.000000e+00> : vector<64x16xf32>
    %23 = tpu.matmul %21, %22, %cst_16 {dimension_numbers = #tpu.dot_dimension_numbers<[1], [0], [0], [1], [0, 0, 1, 1], [], []>} : vector<64x32xf32>, vector<32x16xf32>, vector<64x16xf32> -> vector<64x16xf32>
    %c0_17 = arith.constant 0 : index
    %c0_18 = arith.constant 0 : index
    %24 = vector.load %arg6[%c0_17, %c0_18] : memref<1x16xf32, #tpu.memory_space<vmem>>, vector<1x16xf32>
    %25 = vector.broadcast %24 : vector<1x16xf32> to vector<64x16xf32>
    %26 = arith.addf %23, %25 : vector<64x16xf32>
    %c0_19 = arith.constant 0 : index
    %c0_20 = arith.constant 0 : index
    %27 = vector.load %arg7[%c0_19, %c0_20] : memref<64x16xf32, #tpu.memory_space<vmem>>, vector<64x16xf32>
    tpu.vector_store %arg7[%c0_19, %c0_20], %26 {strides = array<i32>} : memref<64x16xf32, #tpu.memory_space<vmem>>, vector<64x16xf32>,
    return
  }
  func.func @transform_0(%arg0: i32) -> (i32, i32, i32) {
    %c0_i32 = arith.constant 0 : i32
    %c0_i32_0 = arith.constant 0 : i32
    %c0_i32_1 = arith.constant 0 : i32
    return %arg0, %c0_i32, %c0_i32_0 : i32, i32, i32
  }
  func.func @transform_1(%arg0: i32) -> (i32, i32, i32) {
    %c0_i32 = arith.constant 0 : i32
    %c0_i32_0 = arith.constant 0 : i32
    %c0_i32_1 = arith.constant 0 : i32
    return %arg0, %c0_i32, %c0_i32_0 : i32, i32, i32
  }
  func.func @transform_2(%arg0: i32) -> (i32, i32) {
    %c0_i32 = arith.constant 0 : i32
    %c0_i32_0 = arith.constant 0 : i32
    %c0_i32_1 = arith.constant 0 : i32
    return %c0_i32, %c0_i32_0 : i32, i32
  }
  func.func @transform_3(%arg0: i32) -> (i32, i32) {
    %c0_i32 = arith.constant 0 : i32
    %c0_i32_0 = arith.constant 0 : i32
    %c0_i32_1 = arith.constant 0 : i32
    return %c0_i32, %c0_i32_0 : i32, i32
  }
  func.func @transform_4(%arg0: i32) -> (i32, i32) {
    %c0_i32 = arith.constant 0 : i32
    %c0_i32_0 = arith.constant 0 : i32
    %c0_i32_1 = arith.constant 0 : i32
    return %c0_i32, %c0_i32_0 : i32, i32
  }
  func.func @transform_5(%arg0: i32) -> (i32, i32) {
    %c0_i32 = arith.constant 0 : i32
    %c0_i32_0 = arith.constant 0 : i32
    %c0_i32_1 = arith.constant 0 : i32
    return %c0_i32, %c0_i32_0 : i32, i32
  }
  func.func @transform_6(%arg0: i32) -> (i32, i32) {
    %c0_i32 = arith.constant 0 : i32
    %c0_i32_0 = arith.constant 0 : i32
    return %arg0, %c0_i32 : i32, i32
  }
}

</mosaic_0001>

<llo_original>
// kernel: tpu_custom_call.1
$region0: #{tpu_custom_call.1}
  #allocation0 [shape = 'u32[]', space=smem, size = 0x4, offset = 0x4, fixed_abs, tag = 'smem constant byte address 0x4 - core index']
  #allocation1 [shape = 'u32[144,128]{1,0:T(1,128)}', space=vmem, size = 0x12000, scoped, tag = 'internal scratch']
  %s0 = inlined_call_operand.vmem [shape: f32[64,8,16], index: 0, kind: input, shape index: {}]
  %s1 = inlined_call_operand.vmem [shape: f32[64,8,8], index: 1, kind: input, shape index: {}]
  %s2 = inlined_call_operand.vmem [shape: f32[16,32], index: 2, kind: input, shape index: {}]
  %s3 = inlined_call_operand.vmem [shape: f32[1,32], index: 3, kind: input, shape index: {}]
  %s4 = inlined_call_operand.vmem [shape: f32[32,16], index: 4, kind: input, shape index: {}]
  %s5 = inlined_call_operand.vmem [shape: f32[1,16], index: 5, kind: input, shape index: {}]
  %s6 = inlined_call_operand.vmem [shape: f32[64,16], index: 6, kind: output, shape index: {}]
  %s7 = sld [smem:[#allocation0]]
  $region34: #{tpu_custom_call.1} parent=0
    _
  %s9 = ssub.s32 1, %s7
  %s10 = scalar_select 0, %s9, %s7
  // Predicated region
  $region2: #{tpu_custom_call.1} parent=0 // pred_check
    _
  $region3: #{tpu_custom_call.1} parent=0 // pred_check_branch
    %12 = sbr.rel (0) target = $region5
  $region4: #{tpu_custom_call.1} parent=0 // pred_region
    _
  $region5: #{tpu_custom_call.1} parent=0 // pred_fallthru
    _
  // Predicated region
  $region6: #{tpu_custom_call.1} parent=0 // pred_check
    _
  $region7: #{tpu_custom_call.1} parent=0 // pred_check_branch
    %14 = sbr.rel (0) target = $region9
  $region8: #{tpu_custom_call.1} parent=0 // pred_region
    _
  $region9: #{tpu_custom_call.1} parent=0 // pred_fallthru
    _
  // Predicated region
  $region10: #{tpu_custom_call.1} parent=0 // pred_check
    _
  $region11: #{tpu_custom_call.1} parent=0 // pred_check_branch
    %16 = sbr.rel (0) target = $region13
  $region12: #{tpu_custom_call.1} parent=0 // pred_region
    _
  $region13: #{tpu_custom_call.1} parent=0 // pred_fallthru
    _
  // Predicated region
  $region14: #{tpu_custom_call.1} parent=0 // pred_check
    _
  $region15: #{tpu_custom_call.1} parent=0 // pred_check_branch
    %18 = sbr.rel (0) target = $region17
  $region16: #{tpu_custom_call.1} parent=0 // pred_region
    _
  $region17: #{tpu_custom_call.1} parent=0 // pred_fallthru
    _
  // Predicated region
  $region18: #{tpu_custom_call.1} parent=0 // pred_check
    _
  $region19: #{tpu_custom_call.1} parent=0 // pred_check_branch
    %20 = sbr.rel (0) target = $region21
  $region20: #{tpu_custom_call.1} parent=0 // pred_region
    _
  $region21: #{tpu_custom_call.1} parent=0 // pred_fallthru
    _
  // Predicated region
  $region22: #{tpu_custom_call.1} parent=0 // pred_check
    _
  $region23: #{tpu_custom_call.1} parent=0 // pred_check_branch
    %22 = sbr.rel (0) target = $region25
  $region24: #{tpu_custom_call.1} parent=0 // pred_region
    _
  $region25: #{tpu_custom_call.1} parent=0 // pred_fallthru
    _
  %v23 = vld [vmem:[%s0] sm:$0xff]
  %v24 = vld [vmem:[%s0 + $0x8] sm:$0xff]
  %v25 = vld [vmem:[%s0 + $0x10] sm:$0xff]
  %v26 = vld [vmem:[%s0 + $0x18] sm:$0xff]
  %v27 = vld [vmem:[%s0 + $0x20] sm:$0xff]
  %v28 = vld [vmem:[%s0 + $0x28] sm:$0xff]
  %v29 = vld [vmem:[%s0 + $0x30] sm:$0xff]
  %v30 = vld [vmem:[%s0 + $0x38] sm:$0xff]
  %v31 = vld [vmem:[%s0 + $0x40] sm:$0xff]
  %v32 = vld [vmem:[%s0 + $0x48] sm:$0xff]
  %v33 = vld [vmem:[%s0 + $0x50] sm:$0xff]
  %v34 = vld [vmem:[%s0 + $0x58] sm:$0xff]
  %v35 = vld [vmem:[%s0 + $0x60] sm:$0xff]
  %v36 = vld [vmem:[%s0 + $0x68] sm:$0xff]
  %v37 = vld [vmem:[%s0 + $0x70] sm:$0xff]
  %v38 = vld [vmem:[%s0 + $0x78] sm:$0xff]
  %v39 = vld [vmem:[%s0 + $0x80] sm:$0xff]
  %v40 = vld [vmem:[%s0 + $0x88] sm:$0xff]
  %v41 = vld [vmem:[%s0 + $0x90] sm:$0xff]
  %v42 = vld [vmem:[%s0 + $0x98] sm:$0xff]
  %v43 = vld [vmem:[%s0 + $0xa0] sm:$0xff]
  %v44 = vld [vmem:[%s0 + $0xa8] sm:$0xff]
  %v45 = vld [vmem:[%s0 + $0xb0] sm:$0xff]
  %v46 = vld [vmem:[%s0 + $0xb8] sm:$0xff]
  %v47 = vld [vmem:[%s0 + $0xc0] sm:$0xff]
  %v48 = vld [vmem:[%s0 + $0xc8] sm:$0xff]
  %v49 = vld [vmem:[%s0 + $0xd0] sm:$0xff]
  %v50 = vld [vmem:[%s0 + $0xd8] sm:$0xff]
  %v51 = vld [vmem:[%s0 + $0xe0] sm:$0xff]
  %v52 = vld [vmem:[%s0 + $0xe8] sm:$0xff]
  %v53 = vld [vmem:[%s0 + $0xf0] sm:$0xff]
  %v54 = vld [vmem:[%s0 + $0xf8] sm:$0xff]
  %v55 = vld [vmem:[%s0 + $0x100] sm:$0xff]
  %v56 = vld [vmem:[%s0 + $0x108] sm:$0xff]
  %v57 = vld [vmem:[%s0 + $0x110] sm:$0xff]
  %v58 = vld [vmem:[%s0 + $0x118] sm:$0xff]
  %v59 = vld [vmem:[%s0 + $0x120] sm:$0xff]
  %v60 = vld [vmem:[%s0 + $0x128] sm:$0xff]
  %v61 = vld [vmem:[%s0 + $0x130] sm:$0xff]
  %v62 = vld [vmem:[%s0 + $0x138] sm:$0xff]
  %v63 = vld [vmem:[%s0 + $0x140] sm:$0xff]
  %v64 = vld [vmem:[%s0 + $0x148] sm:$0xff]
  %v65 = vld [vmem:[%s0 + $0x150] sm:$0xff]
  %v66 = vld [vmem:[%s0 + $0x158] sm:$0xff]
  %v67 = vld [vmem:[%s0 + $0x160] sm:$0xff]
  %v68 = vld [vmem:[%s0 + $0x168] sm:$0xff]
  %v69 = vld [vmem:[%s0 + $0x170] sm:$0xff]
  %v70 = vld [vmem:[%s0 + $0x178] sm:$0xff]
  %v71 = vld [vmem:[%s0 + $0x180] sm:$0xff]
  %v72 = vld [vmem:[%s0 + $0x188] sm:$0xff]
  %v73 = vld [vmem:[%s0 + $0x190] sm:$0xff]
  %v74 = vld [vmem:[%s0 + $0x198] sm:$0xff]
  %v75 = vld [vmem:[%s0 + $0x1a0] sm:$0xff]
  %v76 = vld [vmem:[%s0 + $0x1a8] sm:$0xff]
  %v77 = vld [vmem:[%s0 + $0x1b0] sm:$0xff]
  %v78 = vld [vmem:[%s0 + $0x1b8] sm:$0xff]
  %v79 = vld [vmem:[%s0 + $0x1c0] sm:$0xff]
  %v80 = vld [vmem:[%s0 + $0x1c8] sm:$0xff]
  %v81 = vld [vmem:[%s0 + $0x1d0] sm:$0xff]
  %v82 = vld [vmem:[%s0 + $0x1d8] sm:$0xff]
  %v83 = vld [vmem:[%s0 + $0x1e0] sm:$0xff]
  %v84 = vld [vmem:[%s0 + $0x1e8] sm:$0xff]
  %v85 = vld [vmem:[%s0 + $0x1f0] sm:$0xff]
  %v86 = vld [vmem:[%s0 + $0x1f8] sm:$0xff]
  %v87 = vld [vmem:[%s1] sm:$0xff]
  %v88 = vld [vmem:[%s1 + $0x8] sm:$0xff]
  %v89 = vld [vmem:[%s1 + $0x10] sm:$0xff]
  %v90 = vld [vmem:[%s1 + $0x18] sm:$0xff]
  %v91 = vld [vmem:[%s1 + $0x20] sm:$0xff]
  %v92 = vld [vmem:[%s1 + $0x28] sm:$0xff]
  %v93 = vld [vmem:[%s1 + $0x30] sm:$0xff]
  %v94 = vld [vmem:[%s1 + $0x38] sm:$0xff]
  %v95 = vld [vmem:[%s1 + $0x40] sm:$0xff]
  %v96 = vld [vmem:[%s1 + $0x48] sm:$0xff]
  %v97 = vld [vmem:[%s1 + $0x50] sm:$0xff]
  %v98 = vld [vmem:[%s1 + $0x58] sm:$0xff]
  %v99 = vld [vmem:[%s1 + $0x60] sm:$0xff]
  %v100 = vld [vmem:[%s1 + $0x68] sm:$0xff]
  %v101 = vld [vmem:[%s1 + $0x70] sm:$0xff]
  %v102 = vld [vmem:[%s1 + $0x78] sm:$0xff]
  %v103 = vld [vmem:[%s1 + $0x80] sm:$0xff]
  %v104 = vld [vmem:[%s1 + $0x88] sm:$0xff]
  %v105 = vld [vmem:[%s1 + $0x90] sm:$0xff]
  %v106 = vld [vmem:[%s1 + $0x98] sm:$0xff]
  %v107 = vld [vmem:[%s1 + $0xa0] sm:$0xff]
  %v108 = vld [vmem:[%s1 + $0xa8] sm:$0xff]
  %v109 = vld [vmem:[%s1 + $0xb0] sm:$0xff]
  %v110 = vld [vmem:[%s1 + $0xb8] sm:$0xff]
  %v111 = vld [vmem:[%s1 + $0xc0] sm:$0xff]
  %v112 = vld [vmem:[%s1 + $0xc8] sm:$0xff]
  %v113 = vld [vmem:[%s1 + $0xd0] sm:$0xff]
  %v114 = vld [vmem:[%s1 + $0xd8] sm:$0xff]
  %v115 = vld [vmem:[%s1 + $0xe0] sm:$0xff]
  %v116 = vld [vmem:[%s1 + $0xe8] sm:$0xff]
  %v117 = vld [vmem:[%s1 + $0xf0] sm:$0xff]
  %v118 = vld [vmem:[%s1 + $0xf8] sm:$0xff]
  %v119 = vld [vmem:[%s1 + $0x100] sm:$0xff]
  %v120 = vld [vmem:[%s1 + $0x108] sm:$0xff]
  %v121 = vld [vmem:[%s1 + $0x110] sm:$0xff]
  %v122 = vld [vmem:[%s1 + $0x118] sm:$0xff]
  %v123 = vld [vmem:[%s1 + $0x120] sm:$0xff]
  %v124 = vld [vmem:[%s1 + $0x128] sm:$0xff]
  %v125 = vld [vmem:[%s1 + $0x130] sm:$0xff]
  %v126 = vld [vmem:[%s1 + $0x138] sm:$0xff]
  %v127 = vld [vmem:[%s1 + $0x140] sm:$0xff]
  %v128 = vld [vmem:[%s1 + $0x148] sm:$0xff]
  %v129 = vld [vmem:[%s1 + $0x150] sm:$0xff]
  %v130 = vld [vmem:[%s1 + $0x158] sm:$0xff]
  %v131 = vld [vmem:[%s1 + $0x160] sm:$0xff]
  %v132 = vld [vmem:[%s1 + $0x168] sm:$0xff]
  %v133 = vld [vmem:[%s1 + $0x170] sm:$0xff]
  %v134 = vld [vmem:[%s1 + $0x178] sm:$0xff]
  %v135 = vld [vmem:[%s1 + $0x180] sm:$0xff]
  %v136 = vld [vmem:[%s1 + $0x188] sm:$0xff]
  %v137 = vld [vmem:[%s1 + $0x190] sm:$0xff]
  %v138 = vld [vmem:[%s1 + $0x198] sm:$0xff]
  %v139 = vld [vmem:[%s1 + $0x1a0] sm:$0xff]
  %v140 = vld [vmem:[%s1 + $0x1a8] sm:$0xff]
  %v141 = vld [vmem:[%s1 + $0x1b0] sm:$0xff]
  %v142 = vld [vmem:[%s1 + $0x1b8] sm:$0xff]
  %v143 = vld [vmem:[%s1 + $0x1c0] sm:$0xff]
  %v144 = vld [vmem:[%s1 + $0x1c8] sm:$0xff]
  %v145 = vld [vmem:[%s1 + $0x1d0] sm:$0xff]
  %v146 = vld [vmem:[%s1 + $0x1d8] sm:$0xff]
  %v147 = vld [vmem:[%s1 + $0x1e0] sm:$0xff]
  %v148 = vld [vmem:[%s1 + $0x1e8] sm:$0xff]
  %v149 = vld [vmem:[%s1 + $0x1f0] sm:$0xff]
  %v150 = vld [vmem:[%s1 + $0x1f8] sm:$0xff]
  %vm151 = vcmask 64512
  %v152 = vsel %vm151, %v87, 0.0
  %v153 = vrot.slane %v152, 4
  %v154 = vadd.f32 %v152, %v153
  %v155 = vrot.slane %v154, 2
  %v156 = vadd.f32 %v154, %v155
  %v157 = vrot.slane %v156, 1
  %v158 = vadd.f32 %v156, %v157
  %v159 = vsel %vm151, %v88, 0.0
  %v160 = vrot.slane %v159, 4
  %v161 = vadd.f32 %v159, %v160
  %v162 = vrot.slane %v161, 2
  %v163 = vadd.f32 %v161, %v162
  %v164 = vrot.slane %v163, 1
  %v165 = vadd.f32 %v163, %v164
  %v166 = vsel %vm151, %v89, 0.0
  %v167 = vrot.slane %v166, 4
  %v168 = vadd.f32 %v166, %v167
  %v169 = vrot.slane %v168, 2
  %v170 = vadd.f32 %v168, %v169
  %v171 = vrot.slane %v170, 1
  %v172 = vadd.f32 %v170, %v171
  %v173 = vsel %vm151, %v90, 0.0
  %v174 = vrot.slane %v173, 4
  %v175 = vadd.f32 %v173, %v174
  %v176 = vrot.slane %v175, 2
  %v177 = vadd.f32 %v175, %v176
  %v178 = vrot.slane %v177, 1
  %v179 = vadd.f32 %v177, %v178
  %v180 = vsel %vm151, %v91, 0.0
  %v181 = vrot.slane %v180, 4
  %v182 = vadd.f32 %v180, %v181
  %v183 = vrot.slane %v182, 2
  %v184 = vadd.f32 %v182, %v183
  %v185 = vrot.slane %v184, 1
  %v186 = vadd.f32 %v184, %v185
  %v187 = vsel %vm151, %v92, 0.0
  %v188 = vrot.slane %v187, 4
  %v189 = vadd.f32 %v187, %v188
  %v190 = vrot.slane %v189, 2
  %v191 = vadd.f32 %v189, %v190
  %v192 = vrot.slane %v191, 1
  %v193 = vadd.f32 %v191, %v192
  %v194 = vsel %vm151, %v93, 0.0
  %v195 = vrot.slane %v194, 4
  %v196 = vadd.f32 %v194, %v195
  %v197 = vrot.slane %v196, 2
  %v198 = vadd.f32 %v196, %v197
  %v199 = vrot.slane %v198, 1
  %v200 = vadd.f32 %v198, %v199
  %v201 = vsel %vm151, %v94, 0.0
  %v202 = vrot.slane %v201, 4
  %v203 = vadd.f32 %v201, %v202
  %v204 = vrot.slane %v203, 2
  %v205 = vadd.f32 %v203, %v204
  %v206 = vrot.slane %v205, 1
  %v207 = vadd.f32 %v205, %v206
  %v208 = vsel %vm151, %v95, 0.0
  %v209 = vrot.slane %v208, 4
  %v210 = vadd.f32 %v208, %v209
  %v211 = vrot.slane %v210, 2
  %v212 = vadd.f32 %v210, %v211
  %v213 = vrot.slane %v212, 1
  %v214 = vadd.f32 %v212, %v213
  %v215 = vsel %vm151, %v96, 0.0
  %v216 = vrot.slane %v215, 4
  %v217 = vadd.f32 %v215, %v216
  %v218 = vrot.slane %v217, 2
  %v219 = vadd.f32 %v217, %v218
  %v220 = vrot.slane %v219, 1
  %v221 = vadd.f32 %v219, %v220
  %v222 = vsel %vm151, %v97, 0.0
  %v223 = vrot.slane %v222, 4
  %v224 = vadd.f32 %v222, %v223
  %v225 = vrot.slane %v224, 2
  %v226 = vadd.f32 %v224, %v225
  %v227 = vrot.slane %v226, 1
  %v228 = vadd.f32 %v226, %v227
  %v229 = vsel %vm151, %v98, 0.0
  %v230 = vrot.slane %v229, 4
  %v231 = vadd.f32 %v229, %v230
  %v232 = vrot.slane %v231, 2
  %v233 = vadd.f32 %v231, %v232
  %v234 = vrot.slane %v233, 1
  %v235 = vadd.f32 %v233, %v234
  %v236 = vsel %vm151, %v99, 0.0
  %v237 = vrot.slane %v236, 4
  %v238 = vadd.f32 %v236, %v237
  %v239 = vrot.slane %v238, 2
  %v240 = vadd.f32 %v238, %v239
  %v241 = vrot.slane %v240, 1
  %v242 = vadd.f32 %v240, %v241
  %v243 = vsel %vm151, %v100, 0.0
  %v244 = vrot.slane %v243, 4
  %v245 = vadd.f32 %v243, %v244
  %v246 = vrot.slane %v245, 2
  %v247 = vadd.f32 %v245, %v246
  %v248 = vrot.slane %v247, 1
  %v249 = vadd.f32 %v247, %v248
  %v250 = vsel %vm151, %v101, 0.0
  %v251 = vrot.slane %v250, 4
  %v252 = vadd.f32 %v250, %v251
  %v253 = vrot.slane %v252, 2
  %v254 = vadd.f32 %v252, %v253
  %v255 = vrot.slane %v254, 1
  %v256 = vadd.f32 %v254, %v255
  %v257 = vsel %vm151, %v102, 0.0
  %v258 = vrot.slane %v257, 4
  %v259 = vadd.f32 %v257, %v258
  %v260 = vrot.slane %v259, 2
  %v261 = vadd.f32 %v259, %v260
  %v262 = vrot.slane %v261, 1
  %v263 = vadd.f32 %v261, %v262
  %v264 = vsel %vm151, %v103, 0.0
  %v265 = vrot.slane %v264, 4
  %v266 = vadd.f32 %v264, %v265
  %v267 = vrot.slane %v266, 2
  %v268 = vadd.f32 %v266, %v267
  %v269 = vrot.slane %v268, 1
  %v270 = vadd.f32 %v268, %v269
  %v271 = vsel %vm151, %v104, 0.0
  %v272 = vrot.slane %v271, 4
  %v273 = vadd.f32 %v271, %v272
  %v274 = vrot.slane %v273, 2
  %v275 = vadd.f32 %v273, %v274
  %v276 = vrot.slane %v275, 1
  %v277 = vadd.f32 %v275, %v276
  %v278 = vsel %vm151, %v105, 0.0
  %v279 = vrot.slane %v278, 4
  %v280 = vadd.f32 %v278, %v279
  %v281 = vrot.slane %v280, 2
  %v282 = vadd.f32 %v280, %v281
  %v283 = vrot.slane %v282, 1
  %v284 = vadd.f32 %v282, %v283
  %v285 = vsel %vm151, %v106, 0.0
  %v286 = vrot.slane %v285, 4
  %v287 = vadd.f32 %v285, %v286
  %v288 = vrot.slane %v287, 2
  %v289 = vadd.f32 %v287, %v288
  %v290 = vrot.slane %v289, 1
  %v291 = vadd.f32 %v289, %v290
  %v292 = vsel %vm151, %v107, 0.0
  %v293 = vrot.slane %v292, 4
  %v294 = vadd.f32 %v292, %v293
  %v295 = vrot.slane %v294, 2
  %v296 = vadd.f32 %v294, %v295
  %v297 = vrot.slane %v296, 1
  %v298 = vadd.f32 %v296, %v297
  %v299 = vsel %vm151, %v108, 0.0
  %v300 = vrot.slane %v299, 4
  %v301 = vadd.f32 %v299, %v300
  %v302 = vrot.slane %v301, 2
  %v303 = vadd.f32 %v301, %v302
  %v304 = vrot.slane %v303, 1
  %v305 = vadd.f32 %v303, %v304
  %v306 = vsel %vm151, %v109, 0.0
  %v307 = vrot.slane %v306, 4
  %v308 = vadd.f32 %v306, %v307
  %v309 = vrot.slane %v308, 2
  %v310 = vadd.f32 %v308, %v309
  %v311 = vrot.slane %v310, 1
  %v312 = vadd.f32 %v310, %v311
  %v313 = vsel %vm151, %v110, 0.0
  %v314 = vrot.slane %v313, 4
  %v315 = vadd.f32 %v313, %v314
  %v316 = vrot.slane %v315, 2
  %v317 = vadd.f32 %v315, %v316
  %v318 = vrot.slane %v317, 1
  %v319 = vadd.f32 %v317, %v318
  %v320 = vsel %vm151, %v111, 0.0
  %v321 = vrot.slane %v320, 4
  %v322 = vadd.f32 %v320, %v321
  %v323 = vrot.slane %v322, 2
  %v324 = vadd.f32 %v322, %v323
  %v325 = vrot.slane %v324, 1
  %v326 = vadd.f32 %v324, %v325
  %v327 = vsel %vm151, %v112, 0.0
  %v328 = vrot.slane %v327, 4
  %v329 = vadd.f32 %v327, %v328
  %v330 = vrot.slane %v329, 2
  %v331 = vadd.f32 %v329, %v330
  %v332 = vrot.slane %v331, 1
  %v333 = vadd.f32 %v331, %v332
  %v334 = vsel %vm151, %v113, 0.0
  %v335 = vrot.slane %v334, 4
  %v336 = vadd.f32 %v334, %v335
  %v337 = vrot.slane %v336, 2
  %v338 = vadd.f32 %v336, %v337
  %v339 = vrot.slane %v338, 1
  %v340 = vadd.f32 %v338, %v339
  %v341 = vsel %vm151, %v114, 0.0
  %v342 = vrot.slane %v341, 4
  %v343 = vadd.f32 %v341, %v342
  %v344 = vrot.slane %v343, 2
  %v345 = vadd.f32 %v343, %v344
  %v346 = vrot.slane %v345, 1
  %v347 = vadd.f32 %v345, %v346
  %v348 = vsel %vm151, %v115, 0.0
  %v349 = vrot.slane %v348, 4
  %v350 = vadd.f32 %v348, %v349
  %v351 = vrot.slane %v350, 2
  %v352 = vadd.f32 %v350, %v351
  %v353 = vrot.slane %v352, 1
  %v354 = vadd.f32 %v352, %v353
  %v355 = vsel %vm151, %v116, 0.0
  %v356 = vrot.slane %v355, 4
  %v357 = vadd.f32 %v355, %v356
  %v358 = vrot.slane %v357, 2
  %v359 = vadd.f32 %v357, %v358
  %v360 = vrot.slane %v359, 1
  %v361 = vadd.f32 %v359, %v360
  %v362 = vsel %vm151, %v117, 0.0
  %v363 = vrot.slane %v362, 4
  %v364 = vadd.f32 %v362, %v363
  %v365 = vrot.slane %v364, 2
  %v366 = vadd.f32 %v364, %v365
  %v367 = vrot.slane %v366, 1
  %v368 = vadd.f32 %v366, %v367
  %v369 = vsel %vm151, %v118, 0.0
  %v370 = vrot.slane %v369, 4
  %v371 = vadd.f32 %v369, %v370
  %v372 = vrot.slane %v371, 2
  %v373 = vadd.f32 %v371, %v372
  %v374 = vrot.slane %v373, 1
  %v375 = vadd.f32 %v373, %v374
  %v376 = vsel %vm151, %v119, 0.0
  %v377 = vrot.slane %v376, 4
  %v378 = vadd.f32 %v376, %v377
  %v379 = vrot.slane %v378, 2
  %v380 = vadd.f32 %v378, %v379
  %v381 = vrot.slane %v380, 1
  %v382 = vadd.f32 %v380, %v381
  %v383 = vsel %vm151, %v120, 0.0
  %v384 = vrot.slane %v383, 4
  %v385 = vadd.f32 %v383, %v384
  %v386 = vrot.slane %v385, 2
  %v387 = vadd.f32 %v385, %v386
  %v388 = vrot.slane %v387, 1
  %v389 = vadd.f32 %v387, %v388
  %v390 = vsel %vm151, %v121, 0.0
  %v391 = vrot.slane %v390, 4
  %v392 = vadd.f32 %v390, %v391
  %v393 = vrot.slane %v392, 2
  %v394 = vadd.f32 %v392, %v393
  %v395 = vrot.slane %v394, 1
  %v396 = vadd.f32 %v394, %v395
  %v397 = vsel %vm151, %v122, 0.0
  %v398 = vrot.slane %v397, 4
  %v399 = vadd.f32 %v397, %v398
  %v400 = vrot.slane %v399, 2
  %v401 = vadd.f32 %v399, %v400
  %v402 = vrot.slane %v401, 1
  %v403 = vadd.f32 %v401, %v402
  %v404 = vsel %vm151, %v123, 0.0
  %v405 = vrot.slane %v404, 4
  %v406 = vadd.f32 %v404, %v405
  %v407 = vrot.slane %v406, 2
  %v408 = vadd.f32 %v406, %v407
  %v409 = vrot.slane %v408, 1
  %v410 = vadd.f32 %v408, %v409
  %v411 = vsel %vm151, %v124, 0.0
  %v412 = vrot.slane %v411, 4
  %v413 = vadd.f32 %v411, %v412
  %v414 = vrot.slane %v413, 2
  %v415 = vadd.f32 %v413, %v414
  %v416 = vrot.slane %v415, 1
  %v417 = vadd.f32 %v415, %v416
  %v418 = vsel %vm151, %v125, 0.0
  %v419 = vrot.slane %v418, 4
  %v420 = vadd.f32 %v418, %v419
  %v421 = vrot.slane %v420, 2
  %v422 = vadd.f32 %v420, %v421
  %v423 = vrot.slane %v422, 1
  %v424 = vadd.f32 %v422, %v423
  %v425 = vsel %vm151, %v126, 0.0
  %v426 = vrot.slane %v425, 4
  %v427 = vadd.f32 %v425, %v426
  %v428 = vrot.slane %v427, 2
  %v429 = vadd.f32 %v427, %v428
  %v430 = vrot.slane %v429, 1
  %v431 = vadd.f32 %v429, %v430
  %v432 = vsel %vm151, %v127, 0.0
  %v433 = vrot.slane %v432, 4
  %v434 = vadd.f32 %v432, %v433
  %v435 = vrot.slane %v434, 2
  %v436 = vadd.f32 %v434, %v435
  %v437 = vrot.slane %v436, 1
  %v438 = vadd.f32 %v436, %v437
  %v439 = vsel %vm151, %v128, 0.0
  %v440 = vrot.slane %v439, 4
  %v441 = vadd.f32 %v439, %v440
  %v442 = vrot.slane %v441, 2
  %v443 = vadd.f32 %v441, %v442
  %v444 = vrot.slane %v443, 1
  %v445 = vadd.f32 %v443, %v444
  %v446 = vsel %vm151, %v129, 0.0
  %v447 = vrot.slane %v446, 4
  %v448 = vadd.f32 %v446, %v447
  %v449 = vrot.slane %v448, 2
  %v450 = vadd.f32 %v448, %v449
  %v451 = vrot.slane %v450, 1
  %v452 = vadd.f32 %v450, %v451
  %v453 = vsel %vm151, %v130, 0.0
  %v454 = vrot.slane %v453, 4
  %v455 = vadd.f32 %v453, %v454
  %v456 = vrot.slane %v455, 2
  %v457 = vadd.f32 %v455, %v456
  %v458 = vrot.slane %v457, 1
  %v459 = vadd.f32 %v457, %v458
  %v460 = vsel %vm151, %v131, 0.0
  %v461 = vrot.slane %v460, 4
  %v462 = vadd.f32 %v460, %v461
  %v463 = vrot.slane %v462, 2
  %v464 = vadd.f32 %v462, %v463
  %v465 = vrot.slane %v464, 1
  %v466 = vadd.f32 %v464, %v465
  %v467 = vsel %vm151, %v132, 0.0
  %v468 = vrot.slane %v467, 4
  %v469 = vadd.f32 %v467, %v468
  %v470 = vrot.slane %v469, 2
  %v471 = vadd.f32 %v469, %v470
  %v472 = vrot.slane %v471, 1
  %v473 = vadd.f32 %v471, %v472
  %v474 = vsel %vm151, %v133, 0.0
  %v475 = vrot.slane %v474, 4
  %v476 = vadd.f32 %v474, %v475
  %v477 = vrot.slane %v476, 2
  %v478 = vadd.f32 %v476, %v477
  %v479 = vrot.slane %v478, 1
  %v480 = vadd.f32 %v478, %v479
  %v481 = vsel %vm151, %v134, 0.0
  %v482 = vrot.slane %v481, 4
  %v483 = vadd.f32 %v481, %v482
  %v484 = vrot.slane %v483, 2
  %v485 = vadd.f32 %v483, %v484
  %v486 = vrot.slane %v485, 1
  %v487 = vadd.f32 %v485, %v486
  %v488 = vsel %vm151, %v135, 0.0
  %v489 = vrot.slane %v488, 4
  %v490 = vadd.f32 %v488, %v489
  %v491 = vrot.slane %v490, 2
  %v492 = vadd.f32 %v490, %v491
  %v493 = vrot.slane %v492, 1
  %v494 = vadd.f32 %v492, %v493
  %v495 = vsel %vm151, %v136, 0.0
  %v496 = vrot.slane %v495, 4
  %v497 = vadd.f32 %v495, %v496
  %v498 = vrot.slane %v497, 2
  %v499 = vadd.f32 %v497, %v498
  %v500 = vrot.slane %v499, 1
  %v501 = vadd.f32 %v499, %v500
  %v502 = vsel %vm151, %v137, 0.0
  %v503 = vrot.slane %v502, 4
  %v504 = vadd.f32 %v502, %v503
  %v505 = vrot.slane %v504, 2
  %v506 = vadd.f32 %v504, %v505
  %v507 = vrot.slane %v506, 1
  %v508 = vadd.f32 %v506, %v507
  %v509 = vsel %vm151, %v138, 0.0
  %v510 = vrot.slane %v509, 4
  %v511 = vadd.f32 %v509, %v510
  %v512 = vrot.slane %v511, 2
  %v513 = vadd.f32 %v511, %v512
  %v514 = vrot.slane %v513, 1
  %v515 = vadd.f32 %v513, %v514
  %v516 = vsel %vm151, %v139, 0.0
  %v517 = vrot.slane %v516, 4
  %v518 = vadd.f32 %v516, %v517
  %v519 = vrot.slane %v518, 2
  %v520 = vadd.f32 %v518, %v519
  %v521 = vrot.slane %v520, 1
  %v522 = vadd.f32 %v520, %v521
  %v523 = vsel %vm151, %v140, 0.0
  %v524 = vrot.slane %v523, 4
  %v525 = vadd.f32 %v523, %v524
  %v526 = vrot.slane %v525, 2
  %v527 = vadd.f32 %v525, %v526
  %v528 = vrot.slane %v527, 1
  %v529 = vadd.f32 %v527, %v528
  %v530 = vsel %vm151, %v141, 0.0
  %v531 = vrot.slane %v530, 4
  %v532 = vadd.f32 %v530, %v531
  %v533 = vrot.slane %v532, 2
  %v534 = vadd.f32 %v532, %v533
  %v535 = vrot.slane %v534, 1
  %v536 = vadd.f32 %v534, %v535
  %v537 = vsel %vm151, %v142, 0.0
  %v538 = vrot.slane %v537, 4
  %v539 = vadd.f32 %v537, %v538
  %v540 = vrot.slane %v539, 2
  %v541 = vadd.f32 %v539, %v540
  %v542 = vrot.slane %v541, 1
  %v543 = vadd.f32 %v541, %v542
  %v544 = vsel %vm151, %v143, 0.0
  %v545 = vrot.slane %v544, 4
  %v546 = vadd.f32 %v544, %v545
  %v547 = vrot.slane %v546, 2
  %v548 = vadd.f32 %v546, %v547
  %v549 = vrot.slane %v548, 1
  %v550 = vadd.f32 %v548, %v549
  %v551 = vsel %vm151, %v144, 0.0
  %v552 = vrot.slane %v551, 4
  %v553 = vadd.f32 %v551, %v552
  %v554 = vrot.slane %v553, 2
  %v555 = vadd.f32 %v553, %v554
  %v556 = vrot.slane %v555, 1
  %v557 = vadd.f32 %v555, %v556
  %v558 = vsel %vm151, %v145, 0.0
  %v559 = vrot.slane %v558, 4
  %v560 = vadd.f32 %v558, %v559
  %v561 = vrot.slane %v560, 2
  %v562 = vadd.f32 %v560, %v561
  %v563 = vrot.slane %v562, 1
  %v564 = vadd.f32 %v562, %v563
  %v565 = vsel %vm151, %v146, 0.0
  %v566 = vrot.slane %v565, 4
  %v567 = vadd.f32 %v565, %v566
  %v568 = vrot.slane %v567, 2
  %v569 = vadd.f32 %v567, %v568
  %v570 = vrot.slane %v569, 1
  %v571 = vadd.f32 %v569, %v570
  %v572 = vsel %vm151, %v147, 0.0
  %v573 = vrot.slane %v572, 4
  %v574 = vadd.f32 %v572, %v573
  %v575 = vrot.slane %v574, 2
  %v576 = vadd.f32 %v574, %v575
  %v577 = vrot.slane %v576, 1
  %v578 = vadd.f32 %v576, %v577
  %v579 = vsel %vm151, %v148, 0.0
  %v580 = vrot.slane %v579, 4
  %v581 = vadd.f32 %v579, %v580
  %v582 = vrot.slane %v581, 2
  %v583 = vadd.f32 %v581, %v582
  %v584 = vrot.slane %v583, 1
  %v585 = vadd.f32 %v583, %v584
  %v586 = vsel %vm151, %v149, 0.0
  %v587 = vrot.slane %v586, 4
  %v588 = vadd.f32 %v586, %v587
  %v589 = vrot.slane %v588, 2
  %v590 = vadd.f32 %v588, %v589
  %v591 = vrot.slane %v590, 1
  %v592 = vadd.f32 %v590, %v591
  %v593 = vsel %vm151, %v150, 0.0
  %v594 = vrot.slane %v593, 4
  %v595 = vadd.f32 %v593, %v594
  %v596 = vrot.slane %v595, 2
  %v597 = vadd.f32 %v595, %v596
  %v598 = vrot.slane %v597, 1
  %v599 = vadd.f32 %v597, %v598
  %v600 = vmul.f32 %v158, 0.125
  %v601 = vmul.f32 %v165, 0.125
  %v602 = vmul.f32 %v172, 0.125
  %v603 = vmul.f32 %v179, 0.125
  %v604 = vmul.f32 %v186, 0.125
  %v605 = vmul.f32 %v193, 0.125
  %v606 = vmul.f32 %v200, 0.125
  %v607 = vmul.f32 %v207, 0.125
  %v608 = vmul.f32 %v214, 0.125
  %v609 = vmul.f32 %v221, 0.125
  %v610 = vmul.f32 %v228, 0.125
  %v611 = vmul.f32 %v235, 0.125
  %v612 = vmul.f32 %v242, 0.125
  %v613 = vmul.f32 %v249, 0.125
  %v614 = vmul.f32 %v256, 0.125
  %v615 = vmul.f32 %v263, 0.125
  %v616 = vmul.f32 %v270, 0.125
  %v617 = vmul.f32 %v277, 0.125
  %v618 = vmul.f32 %v284, 0.125
  %v619 = vmul.f32 %v291, 0.125
  %v620 = vmul.f32 %v298, 0.125
  %v621 = vmul.f32 %v305, 0.125
  %v622 = vmul.f32 %v312, 0.125
  %v623 = vmul.f32 %v319, 0.125
  %v624 = vmul.f32 %v326, 0.125
  %v625 = vmul.f32 %v333, 0.125
  %v626 = vmul.f32 %v340, 0.125
  %v627 = vmul.f32 %v347, 0.125
  %v628 = vmul.f32 %v354, 0.125
  %v629 = vmul.f32 %v361, 0.125
  %v630 = vmul.f32 %v368, 0.125
  %v631 = vmul.f32 %v375, 0.125
  %v632 = vmul.f32 %v382, 0.125
  %v633 = vmul.f32 %v389, 0.125
  %v634 = vmul.f32 %v396, 0.125
  %v635 = vmul.f32 %v403, 0.125
  %v636 = vmul.f32 %v410, 0.125
  %v637 = vmul.f32 %v417, 0.125
  %v638 = vmul.f32 %v424, 0.125
  %v639 = vmul.f32 %v431, 0.125
  %v640 = vmul.f32 %v438, 0.125
  %v641 = vmul.f32 %v445, 0.125
  %v642 = vmul.f32 %v452, 0.125
  %v643 = vmul.f32 %v459, 0.125
  %v644 = vmul.f32 %v466, 0.125
  %v645 = vmul.f32 %v473, 0.125
  %v646 = vmul.f32 %v480, 0.125
  %v647 = vmul.f32 %v487, 0.125
  %v648 = vmul.f32 %v494, 0.125
  %v649 = vmul.f32 %v501, 0.125
  %v650 = vmul.f32 %v508, 0.125
  %v651 = vmul.f32 %v515, 0.125
  %v652 = vmul.f32 %v522, 0.125
  %v653 = vmul.f32 %v529, 0.125
  %v654 = vmul.f32 %v536, 0.125
  %v655 = vmul.f32 %v543, 0.125
  %v656 = vmul.f32 %v550, 0.125
  %v657 = vmul.f32 %v557, 0.125
  %v658 = vmul.f32 %v564, 0.125
  %v659 = vmul.f32 %v571, 0.125
  %v660 = vmul.f32 %v578, 0.125
  %v661 = vmul.f32 %v585, 0.125
  %v662 = vmul.f32 %v592, 0.125
  %v663 = vmul.f32 %v599, 0.125
  %665 = vbcast.lane.b32.xlu0 %v600, 256
  %v666 = vpop.permute.xlu0 %665
  %668 = vbcast.lane.b32.xlu0 %v601, 256
  %v669 = vpop.permute.xlu0 %668
  %671 = vbcast.lane.b32.xlu0 %v602, 256
  %v672 = vpop.permute.xlu0 %671
  %674 = vbcast.lane.b32.xlu0 %v603, 256
  %v675 = vpop.permute.xlu0 %674
  %677 = vbcast.lane.b32.xlu0 %v604, 256
  %v678 = vpop.permute.xlu0 %677
  %680 = vbcast.lane.b32.xlu0 %v605, 256
  %v681 = vpop.permute.xlu0 %680
  %683 = vbcast.lane.b32.xlu0 %v606, 256
  %v684 = vpop.permute.xlu0 %683
  %686 = vbcast.lane.b32.xlu0 %v607, 256
  %v687 = vpop.permute.xlu0 %686
  %689 = vbcast.lane.b32.xlu0 %v608, 256
  %v690 = vpop.permute.xlu0 %689
  %692 = vbcast.lane.b32.xlu0 %v609, 256
  %v693 = vpop.permute.xlu0 %692
  %695 = vbcast.lane.b32.xlu0 %v610, 256
  %v696 = vpop.permute.xlu0 %695
  %698 = vbcast.lane.b32.xlu0 %v611, 256
  %v699 = vpop.permute.xlu0 %698
  %701 = vbcast.lane.b32.xlu0 %v612, 256
  %v702 = vpop.permute.xlu0 %701
  %704 = vbcast.lane.b32.xlu0 %v613, 256
  %v705 = vpop.permute.xlu0 %704
  %707 = vbcast.lane.b32.xlu0 %v614, 256
  %v708 = vpop.permute.xlu0 %707
  %710 = vbcast.lane.b32.xlu0 %v615, 256
  %v711 = vpop.permute.xlu0 %710
  %713 = vbcast.lane.b32.xlu0 %v616, 256
  %v714 = vpop.permute.xlu0 %713
  %716 = vbcast.lane.b32.xlu0 %v617, 256
  %v717 = vpop.permute.xlu0 %716
  %719 = vbcast.lane.b32.xlu0 %v618, 256
  %v720 = vpop.permute.xlu0 %719
  %722 = vbcast.lane.b32.xlu0 %v619, 256
  %v723 = vpop.permute.xlu0 %722
  %725 = vbcast.lane.b32.xlu0 %v620, 256
  %v726 = vpop.permute.xlu0 %725
  %728 = vbcast.lane.b32.xlu0 %v621, 256
  %v729 = vpop.permute.xlu0 %728
  %731 = vbcast.lane.b32.xlu0 %v622, 256
  %v732 = vpop.permute.xlu0 %731
  %734 = vbcast.lane.b32.xlu0 %v623, 256
  %v735 = vpop.permute.xlu0 %734
  %737 = vbcast.lane.b32.xlu0 %v624, 256
  %v738 = vpop.permute.xlu0 %737
  %740 = vbcast.lane.b32.xlu0 %v625, 256
  %v741 = vpop.permute.xlu0 %740
  %743 = vbcast.lane.b32.xlu0 %v626, 256
  %v744 = vpop.permute.xlu0 %743
  %746 = vbcast.lane.b32.xlu0 %v627, 256
  %v747 = vpop.permute.xlu0 %746
  %749 = vbcast.lane.b32.xlu0 %v628, 256
  %v750 = vpop.permute.xlu0 %749
  %752 = vbcast.lane.b32.xlu0 %v629, 256
  %v753 = vpop.permute.xlu0 %752
  %755 = vbcast.lane.b32.xlu0 %v630, 256
  %v756 = vpop.permute.xlu0 %755
  %758 = vbcast.lane.b32.xlu0 %v631, 256
  %v759 = vpop.permute.xlu0 %758
  %761 = vbcast.lane.b32.xlu0 %v632, 256
  %v762 = vpop.permute.xlu0 %761
  %764 = vbcast.lane.b32.xlu0 %v633, 256
  %v765 = vpop.permute.xlu0 %764
  %767 = vbcast.lane.b32.xlu0 %v634, 256
  %v768 = vpop.permute.xlu0 %767
  %770 = vbcast.lane.b32.xlu0 %v635, 256
  %v771 = vpop.permute.xlu0 %770
  %773 = vbcast.lane.b32.xlu0 %v636, 256
  %v774 = vpop.permute.xlu0 %773
  %776 = vbcast.lane.b32.xlu0 %v637, 256
  %v777 = vpop.permute.xlu0 %776
  %779 = vbcast.lane.b32.xlu0 %v638, 256
  %v780 = vpop.permute.xlu0 %779
  %782 = vbcast.lane.b32.xlu0 %v639, 256
  %v783 = vpop.permute.xlu0 %782
  %785 = vbcast.lane.b32.xlu0 %v640, 256
  %v786 = vpop.permute.xlu0 %785
  %788 = vbcast.lane.b32.xlu0 %v641, 256
  %v789 = vpop.permute.xlu0 %788
  %791 = vbcast.lane.b32.xlu0 %v642, 256
  %v792 = vpop.permute.xlu0 %791
  %794 = vbcast.lane.b32.xlu0 %v643, 256
  %v795 = vpop.permute.xlu0 %794
  %797 = vbcast.lane.b32.xlu0 %v644, 256
  %v798 = vpop.permute.xlu0 %797
  %800 = vbcast.lane.b32.xlu0 %v645, 256
  %v801 = vpop.permute.xlu0 %800
  %803 = vbcast.lane.b32.xlu0 %v646, 256
  %v804 = vpop.permute.xlu0 %803
  %806 = vbcast.lane.b32.xlu0 %v647, 256
  %v807 = vpop.permute.xlu0 %806
  %809 = vbcast.lane.b32.xlu0 %v648, 256
  %v810 = vpop.permute.xlu0 %809
  %812 = vbcast.lane.b32.xlu0 %v649, 256
  %v813 = vpop.permute.xlu0 %812
  %815 = vbcast.lane.b32.xlu0 %v650, 256
  %v816 = vpop.permute.xlu0 %815
  %818 = vbcast.lane.b32.xlu0 %v651, 256
  %v819 = vpop.permute.xlu0 %818
  %821 = vbcast.lane.b32.xlu0 %v652, 256
  %v822 = vpop.permute.xlu0 %821
  %824 = vbcast.lane.b32.xlu0 %v653, 256
  %v825 = vpop.permute.xlu0 %824
  %827 = vbcast.lane.b32.xlu0 %v654, 256
  %v828 = vpop.permute.xlu0 %827
  %830 = vbcast.lane.b32.xlu0 %v655, 256
  %v831 = vpop.permute.xlu0 %830
  %833 = vbcast.lane.b32.xlu0 %v656, 256
  %v834 = vpop.permute.xlu0 %833
  %836 = vbcast.lane.b32.xlu0 %v657, 256
  %v837 = vpop.permute.xlu0 %836
  %839 = vbcast.lane.b32.xlu0 %v658, 256
  %v840 = vpop.permute.xlu0 %839
  %842 = vbcast.lane.b32.xlu0 %v659, 256
  %v843 = vpop.permute.xlu0 %842
  %845 = vbcast.lane.b32.xlu0 %v660, 256
  %v846 = vpop.permute.xlu0 %845
  %848 = vbcast.lane.b32.xlu0 %v661, 256
  %v849 = vpop.permute.xlu0 %848
  %851 = vbcast.lane.b32.xlu0 %v662, 256
  %v852 = vpop.permute.xlu0 %851
  %854 = vbcast.lane.b32.xlu0 %v663, 256
  %v855 = vpop.permute.xlu0 %854
  %v856 = vmul.f32 %v666, %v87
  %v857 = vmul.f32 %v669, %v88
  %v858 = vmul.f32 %v672, %v89
  %v859 = vmul.f32 %v675, %v90
  %v860 = vmul.f32 %v678, %v91
  %v861 = vmul.f32 %v681, %v92
  %v862 = vmul.f32 %v684, %v93
  %v863 = vmul.f32 %v687, %v94
  %v864 = vmul.f32 %v690, %v95
  %v865 = vmul.f32 %v693, %v96
  %v866 = vmul.f32 %v696, %v97
  %v867 = vmul.f32 %v699, %v98
  %v868 = vmul.f32 %v702, %v99
  %v869 = vmul.f32 %v705, %v100
  %v870 = vmul.f32 %v708, %v101
  %v871 = vmul.f32 %v711, %v102
  %v872 = vmul.f32 %v714, %v103
  %v873 = vmul.f32 %v717, %v104
  %v874 = vmul.f32 %v720, %v105
  %v875 = vmul.f32 %v723, %v106
  %v876 = vmul.f32 %v726, %v107
  %v877 = vmul.f32 %v729, %v108
  %v878 = vmul.f32 %v732, %v109
  %v879 = vmul.f32 %v735, %v110
  %v880 = vmul.f32 %v738, %v111
  %v881 = vmul.f32 %v741, %v112
  %v882 = vmul.f32 %v744, %v113
  %v883 = vmul.f32 %v747, %v114
  %v884 = vmul.f32 %v750, %v115
  %v885 = vmul.f32 %v753, %v116
  %v886 = vmul.f32 %v756, %v117
  %v887 = vmul.f32 %v759, %v118
  %v888 = vmul.f32 %v762, %v119
  %v889 = vmul.f32 %v765, %v120
  %v890 = vmul.f32 %v768, %v121
  %v891 = vmul.f32 %v771, %v122
  %v892 = vmul.f32 %v774, %v123
  %v893 = vmul.f32 %v777, %v124
  %v894 = vmul.f32 %v780, %v125
  %v895 = vmul.f32 %v783, %v126
  %v896 = vmul.f32 %v786, %v127
  %v897 = vmul.f32 %v789, %v128
  %v898 = vmul.f32 %v792, %v129
  %v899 = vmul.f32 %v795, %v130
  %v900 = vmul.f32 %v798, %v131
  %v901 = vmul.f32 %v801, %v132
  %v902 = vmul.f32 %v804, %v133
  %v903 = vmul.f32 %v807, %v134
  %v904 = vmul.f32 %v810, %v135
  %v905 = vmul.f32 %v813, %v136
  %v906 = vmul.f32 %v816, %v137
  %v907 = vmul.f32 %v819, %v138
  %v908 = vmul.f32 %v822, %v139
  %v909 = vmul.f32 %v825, %v140
  %v910 = vmul.f32 %v828, %v141
  %v911 = vmul.f32 %v831, %v142
  %v912 = vmul.f32 %v834, %v143
  %v913 = vmul.f32 %v837, %v144
  %v914 = vmul.f32 %v840, %v145
  %v915 = vmul.f32 %v843, %v146
  %v916 = vmul.f32 %v846, %v147
  %v917 = vmul.f32 %v849, %v148
  %v918 = vmul.f32 %v852, %v149
  %v919 = vmul.f32 %v855, %v150
  %v920 = vsel %vm151, %v856, 0.0
  %v921 = vrot.slane %v920, 4
  %v922 = vadd.f32 %v920, %v921
  %v923 = vrot.slane %v922, 2
  %v924 = vadd.f32 %v922, %v923
  %v925 = vrot.slane %v924, 1
  %v926 = vadd.f32 %v924, %v925
  %v927 = vsel %vm151, %v857, 0.0
  %v928 = vrot.slane %v927, 4
  %v929 = vadd.f32 %v927, %v928
  %v930 = vrot.slane %v929, 2
  %v931 = vadd.f32 %v929, %v930
  %v932 = vrot.slane %v931, 1
  %v933 = vadd.f32 %v931, %v932
  %v934 = vsel %vm151, %v858, 0.0
  %v935 = vrot.slane %v934, 4
  %v936 = vadd.f32 %v934, %v935
  %v937 = vrot.slane %v936, 2
  %v938 = vadd.f32 %v936, %v937
  %v939 = vrot.slane %v938, 1
  %v940 = vadd.f32 %v938, %v939
  %v941 = vsel %vm151, %v859, 0.0
  %v942 = vrot.slane %v941, 4
  %v943 = vadd.f32 %v941, %v942
  %v944 = vrot.slane %v943, 2
  %v945 = vadd.f32 %v943, %v944
  %v946 = vrot.slane %v945, 1
  %v947 = vadd.f32 %v945, %v946
  %v948 = vsel %vm151, %v860, 0.0
  %v949 = vrot.slane %v948, 4
  %v950 = vadd.f32 %v948, %v949
  %v951 = vrot.slane %v950, 2
  %v952 = vadd.f32 %v950, %v951
  %v953 = vrot.slane %v952, 1
  %v954 = vadd.f32 %v952, %v953
  %v955 = vsel %vm151, %v861, 0.0
  %v956 = vrot.slane %v955, 4
  %v957 = vadd.f32 %v955, %v956
  %v958 = vrot.slane %v957, 2
  %v959 = vadd.f32 %v957, %v958
  %v960 = vrot.slane %v959, 1
  %v961 = vadd.f32 %v959, %v960
  %v962 = vsel %vm151, %v862, 0.0
  %v963 = vrot.slane %v962, 4
  %v964 = vadd.f32 %v962, %v963
  %v965 = vrot.slane %v964, 2
  %v966 = vadd.f32 %v964, %v965
  %v967 = vrot.slane %v966, 1
  %v968 = vadd.f32 %v966, %v967
  %v969 = vsel %vm151, %v863, 0.0
  %v970 = vrot.slane %v969, 4
  %v971 = vadd.f32 %v969, %v970
  %v972 = vrot.slane %v971, 2
  %v973 = vadd.f32 %v971, %v972
  %v974 = vrot.slane %v973, 1
  %v975 = vadd.f32 %v973, %v974
  %v976 = vsel %vm151, %v864, 0.0
  %v977 = vrot.slane %v976, 4
  %v978 = vadd.f32 %v976, %v977
  %v979 = vrot.slane %v978, 2
  %v980 = vadd.f32 %v978, %v979
  %v981 = vrot.slane %v980, 1
  %v982 = vadd.f32 %v980, %v981
  %v983 = vsel %vm151, %v865, 0.0
  %v984 = vrot.slane %v983, 4
  %v985 = vadd.f32 %v983, %v984
  %v986 = vrot.slane %v985, 2
  %v987 = vadd.f32 %v985, %v986
  %v988 = vrot.slane %v987, 1
  %v989 = vadd.f32 %v987, %v988
  %v990 = vsel %vm151, %v866, 0.0
  %v991 = vrot.slane %v990, 4
  %v992 = vadd.f32 %v990, %v991
  %v993 = vrot.slane %v992, 2
  %v994 = vadd.f32 %v992, %v993
  %v995 = vrot.slane %v994, 1
  %v996 = vadd.f32 %v994, %v995
  %v997 = vsel %vm151, %v867, 0.0
  %v998 = vrot.slane %v997, 4
  %v999 = vadd.f32 %v997, %v998
  %v1000 = vrot.slane %v999, 2
  %v1001 = vadd.f32 %v999, %v1000
  %v1002 = vrot.slane %v1001, 1
  %v1003 = vadd.f32 %v1001, %v1002
  %v1004 = vsel %vm151, %v868, 0.0
  %v1005 = vrot.slane %v1004, 4
  %v1006 = vadd.f32 %v1004, %v1005
  %v1007 = vrot.slane %v1006, 2
  %v1008 = vadd.f32 %v1006, %v1007
  %v1009 = vrot.slane %v1008, 1
  %v1010 = vadd.f32 %v1008, %v1009
  %v1011 = vsel %vm151, %v869, 0.0
  %v1012 = vrot.slane %v1011, 4
  %v1013 = vadd.f32 %v1011, %v1012
  %v1014 = vrot.slane %v1013, 2
  %v1015 = vadd.f32 %v1013, %v1014
  %v1016 = vrot.slane %v1015, 1
  %v1017 = vadd.f32 %v1015, %v1016
  %v1018 = vsel %vm151, %v870, 0.0
  %v1019 = vrot.slane %v1018, 4
  %v1020 = vadd.f32 %v1018, %v1019
  %v1021 = vrot.slane %v1020, 2
  %v1022 = vadd.f32 %v1020, %v1021
  %v1023 = vrot.slane %v1022, 1
  %v1024 = vadd.f32 %v1022, %v1023
  %v1025 = vsel %vm151, %v871, 0.0
  %v1026 = vrot.slane %v1025, 4
  %v1027 = vadd.f32 %v1025, %v1026
  %v1028 = vrot.slane %v1027, 2
  %v1029 = vadd.f32 %v1027, %v1028
  %v1030 = vrot.slane %v1029, 1
  %v1031 = vadd.f32 %v1029, %v1030
  %v1032 = vsel %vm151, %v872, 0.0
  %v1033 = vrot.slane %v1032, 4
  %v1034 = vadd.f32 %v1032, %v1033
  %v1035 = vrot.slane %v1034, 2
  %v1036 = vadd.f32 %v1034, %v1035
  %v1037 = vrot.slane %v1036, 1
  %v1038 = vadd.f32 %v1036, %v1037
  %v1039 = vsel %vm151, %v873, 0.0
  %v1040 = vrot.slane %v1039, 4
  %v1041 = vadd.f32 %v1039, %v1040
  %v1042 = vrot.slane %v1041, 2
  %v1043 = vadd.f32 %v1041, %v1042
  %v1044 = vrot.slane %v1043, 1
  %v1045 = vadd.f32 %v1043, %v1044
  %v1046 = vsel %vm151, %v874, 0.0
  %v1047 = vrot.slane %v1046, 4
  %v1048 = vadd.f32 %v1046, %v1047
  %v1049 = vrot.slane %v1048, 2
  %v1050 = vadd.f32 %v1048, %v1049
  %v1051 = vrot.slane %v1050, 1
  %v1052 = vadd.f32 %v1050, %v1051
  %v1053 = vsel %vm151, %v875, 0.0
  %v1054 = vrot.slane %v1053, 4
  %v1055 = vadd.f32 %v1053, %v1054
  %v1056 = vrot.slane %v1055, 2
  %v1057 = vadd.f32 %v1055, %v1056
  %v1058 = vrot.slane %v1057, 1
  %v1059 = vadd.f32 %v1057, %v1058
  %v1060 = vsel %vm151, %v876, 0.0
  %v1061 = vrot.slane %v1060, 4
  %v1062 = vadd.f32 %v1060, %v1061
  %v1063 = vrot.slane %v1062, 2
  %v1064 = vadd.f32 %v1062, %v1063
  %v1065 = vrot.slane %v1064, 1
  %v1066 = vadd.f32 %v1064, %v1065
  %v1067 = vsel %vm151, %v877, 0.0
  %v1068 = vrot.slane %v1067, 4
  %v1069 = vadd.f32 %v1067, %v1068
  %v1070 = vrot.slane %v1069, 2
  %v1071 = vadd.f32 %v1069, %v1070
  %v1072 = vrot.slane %v1071, 1
  %v1073 = vadd.f32 %v1071, %v1072
  %v1074 = vsel %vm151, %v878, 0.0
  %v1075 = vrot.slane %v1074, 4
  %v1076 = vadd.f32 %v1074, %v1075
  %v1077 = vrot.slane %v1076, 2
  %v1078 = vadd.f32 %v1076, %v1077
  %v1079 = vrot.slane %v1078, 1
  %v1080 = vadd.f32 %v1078, %v1079
  %v1081 = vsel %vm151, %v879, 0.0
  %v1082 = vrot.slane %v1081, 4
  %v1083 = vadd.f32 %v1081, %v1082
  %v1084 = vrot.slane %v1083, 2
  %v1085 = vadd.f32 %v1083, %v1084
  %v1086 = vrot.slane %v1085, 1
  %v1087 = vadd.f32 %v1085, %v1086
  %v1088 = vsel %vm151, %v880, 0.0
  %v1089 = vrot.slane %v1088, 4
  %v1090 = vadd.f32 %v1088, %v1089
  %v1091 = vrot.slane %v1090, 2
  %v1092 = vadd.f32 %v1090, %v1091
  %v1093 = vrot.slane %v1092, 1
  %v1094 = vadd.f32 %v1092, %v1093
  %v1095 = vsel %vm151, %v881, 0.0
  %v1096 = vrot.slane %v1095, 4
  %v1097 = vadd.f32 %v1095, %v1096
  %v1098 = vrot.slane %v1097, 2
  %v1099 = vadd.f32 %v1097, %v1098
  %v1100 = vrot.slane %v1099, 1
  %v1101 = vadd.f32 %v1099, %v1100
  %v1102 = vsel %vm151, %v882, 0.0
  %v1103 = vrot.slane %v1102, 4
  %v1104 = vadd.f32 %v1102, %v1103
  %v1105 = vrot.slane %v1104, 2
  %v1106 = vadd.f32 %v1104, %v1105
  %v1107 = vrot.slane %v1106, 1
  %v1108 = vadd.f32 %v1106, %v1107
  %v1109 = vsel %vm151, %v883, 0.0
  %v1110 = vrot.slane %v1109, 4
  %v1111 = vadd.f32 %v1109, %v1110
  %v1112 = vrot.slane %v1111, 2
  %v1113 = vadd.f32 %v1111, %v1112
  %v1114 = vrot.slane %v1113, 1
  %v1115 = vadd.f32 %v1113, %v1114
  %v1116 = vsel %vm151, %v884, 0.0
  %v1117 = vrot.slane %v1116, 4
  %v1118 = vadd.f32 %v1116, %v1117
  %v1119 = vrot.slane %v1118, 2
  %v1120 = vadd.f32 %v1118, %v1119
  %v1121 = vrot.slane %v1120, 1
  %v1122 = vadd.f32 %v1120, %v1121
  %v1123 = vsel %vm151, %v885, 0.0
  %v1124 = vrot.slane %v1123, 4
  %v1125 = vadd.f32 %v1123, %v1124
  %v1126 = vrot.slane %v1125, 2
  %v1127 = vadd.f32 %v1125, %v1126
  %v1128 = vrot.slane %v1127, 1
  %v1129 = vadd.f32 %v1127, %v1128
  %v1130 = vsel %vm151, %v886, 0.0
  %v1131 = vrot.slane %v1130, 4
  %v1132 = vadd.f32 %v1130, %v1131
  %v1133 = vrot.slane %v1132, 2
  %v1134 = vadd.f32 %v1132, %v1133
  %v1135 = vrot.slane %v1134, 1
  %v1136 = vadd.f32 %v1134, %v1135
  %v1137 = vsel %vm151, %v887, 0.0
  %v1138 = vrot.slane %v1137, 4
  %v1139 = vadd.f32 %v1137, %v1138
  %v1140 = vrot.slane %v1139, 2
  %v1141 = vadd.f32 %v1139, %v1140
  %v1142 = vrot.slane %v1141, 1
  %v1143 = vadd.f32 %v1141, %v1142
  %v1144 = vsel %vm151, %v888, 0.0
  %v1145 = vrot.slane %v1144, 4
  %v1146 = vadd.f32 %v1144, %v1145
  %v1147 = vrot.slane %v1146, 2
  %v1148 = vadd.f32 %v1146, %v1147
  %v1149 = vrot.slane %v1148, 1
  %v1150 = vadd.f32 %v1148, %v1149
  %v1151 = vsel %vm151, %v889, 0.0
  %v1152 = vrot.slane %v1151, 4
  %v1153 = vadd.f32 %v1151, %v1152
  %v1154 = vrot.slane %v1153, 2
  %v1155 = vadd.f32 %v1153, %v1154
  %v1156 = vrot.slane %v1155, 1
  %v1157 = vadd.f32 %v1155, %v1156
  %v1158 = vsel %vm151, %v890, 0.0
  %v1159 = vrot.slane %v1158, 4
  %v1160 = vadd.f32 %v1158, %v1159
  %v1161 = vrot.slane %v1160, 2
  %v1162 = vadd.f32 %v1160, %v1161
  %v1163 = vrot.slane %v1162, 1
  %v1164 = vadd.f32 %v1162, %v1163
  %v1165 = vsel %vm151, %v891, 0.0
  %v1166 = vrot.slane %v1165, 4
  %v1167 = vadd.f32 %v1165, %v1166
  %v1168 = vrot.slane %v1167, 2
  %v1169 = vadd.f32 %v1167, %v1168
  %v1170 = vrot.slane %v1169, 1
  %v1171 = vadd.f32 %v1169, %v1170
  %v1172 = vsel %vm151, %v892, 0.0
  %v1173 = vrot.slane %v1172, 4
  %v1174 = vadd.f32 %v1172, %v1173
  %v1175 = vrot.slane %v1174, 2
  %v1176 = vadd.f32 %v1174, %v1175
  %v1177 = vrot.slane %v1176, 1
  %v1178 = vadd.f32 %v1176, %v1177
  %v1179 = vsel %vm151, %v893, 0.0
  %v1180 = vrot.slane %v1179, 4
  %v1181 = vadd.f32 %v1179, %v1180
  %v1182 = vrot.slane %v1181, 2
  %v1183 = vadd.f32 %v1181, %v1182
  %v1184 = vrot.slane %v1183, 1
  %v1185 = vadd.f32 %v1183, %v1184
  %v1186 = vsel %vm151, %v894, 0.0
  %v1187 = vrot.slane %v1186, 4
  %v1188 = vadd.f32 %v1186, %v1187
  %v1189 = vrot.slane %v1188, 2
  %v1190 = vadd.f32 %v1188, %v1189
  %v1191 = vrot.slane %v1190, 1
  %v1192 = vadd.f32 %v1190, %v1191
  %v1193 = vsel %vm151, %v895, 0.0
  %v1194 = vrot.slane %v1193, 4
  %v1195 = vadd.f32 %v1193, %v1194
  %v1196 = vrot.slane %v1195, 2
  %v1197 = vadd.f32 %v1195, %v1196
  %v1198 = vrot.slane %v1197, 1
  %v1199 = vadd.f32 %v1197, %v1198
  %v1200 = vsel %vm151, %v896, 0.0
  %v1201 = vrot.slane %v1200, 4
  %v1202 = vadd.f32 %v1200, %v1201
  %v1203 = vrot.slane %v1202, 2
  %v1204 = vadd.f32 %v1202, %v1203
  %v1205 = vrot.slane %v1204, 1
  %v1206 = vadd.f32 %v1204, %v1205
  %v1207 = vsel %vm151, %v897, 0.0
  %v1208 = vrot.slane %v1207, 4
  %v1209 = vadd.f32 %v1207, %v1208
  %v1210 = vrot.slane %v1209, 2
  %v1211 = vadd.f32 %v1209, %v1210
  %v1212 = vrot.slane %v1211, 1
  %v1213 = vadd.f32 %v1211, %v1212
  %v1214 = vsel %vm151, %v898, 0.0
  %v1215 = vrot.slane %v1214, 4
  %v1216 = vadd.f32 %v1214, %v1215
  %v1217 = vrot.slane %v1216, 2
  %v1218 = vadd.f32 %v1216, %v1217
  %v1219 = vrot.slane %v1218, 1
  %v1220 = vadd.f32 %v1218, %v1219
  %v1221 = vsel %vm151, %v899, 0.0
  %v1222 = vrot.slane %v1221, 4
  %v1223 = vadd.f32 %v1221, %v1222
  %v1224 = vrot.slane %v1223, 2
  %v1225 = vadd.f32 %v1223, %v1224
  %v1226 = vrot.slane %v1225, 1
  %v1227 = vadd.f32 %v1225, %v1226
  %v1228 = vsel %vm151, %v900, 0.0
  %v1229 = vrot.slane %v1228, 4
  %v1230 = vadd.f32 %v1228, %v1229
  %v1231 = vrot.slane %v1230, 2
  %v1232 = vadd.f32 %v1230, %v1231
  %v1233 = vrot.slane %v1232, 1
  %v1234 = vadd.f32 %v1232, %v1233
  %v1235 = vsel %vm151, %v901, 0.0
  %v1236 = vrot.slane %v1235, 4
  %v1237 = vadd.f32 %v1235, %v1236
  %v1238 = vrot.slane %v1237, 2
  %v1239 = vadd.f32 %v1237, %v1238
  %v1240 = vrot.slane %v1239, 1
  %v1241 = vadd.f32 %v1239, %v1240
  %v1242 = vsel %vm151, %v902, 0.0
  %v1243 = vrot.slane %v1242, 4
  %v1244 = vadd.f32 %v1242, %v1243
  %v1245 = vrot.slane %v1244, 2
  %v1246 = vadd.f32 %v1244, %v1245
  %v1247 = vrot.slane %v1246, 1
  %v1248 = vadd.f32 %v1246, %v1247
  %v1249 = vsel %vm151, %v903, 0.0
  %v1250 = vrot.slane %v1249, 4
  %v1251 = vadd.f32 %v1249, %v1250
  %v1252 = vrot.slane %v1251, 2
  %v1253 = vadd.f32 %v1251, %v1252
  %v1254 = vrot.slane %v1253, 1
  %v1255 = vadd.f32 %v1253, %v1254
  %v1256 = vsel %vm151, %v904, 0.0
  %v1257 = vrot.slane %v1256, 4
  %v1258 = vadd.f32 %v1256, %v1257
  %v1259 = vrot.slane %v1258, 2
  %v1260 = vadd.f32 %v1258, %v1259
  %v1261 = vrot.slane %v1260, 1
  %v1262 = vadd.f32 %v1260, %v1261
  %v1263 = vsel %vm151, %v905, 0.0
  %v1264 = vrot.slane %v1263, 4
  %v1265 = vadd.f32 %v1263, %v1264
  %v1266 = vrot.slane %v1265, 2
  %v1267 = vadd.f32 %v1265, %v1266
  %v1268 = vrot.slane %v1267, 1
  %v1269 = vadd.f32 %v1267, %v1268
  %v1270 = vsel %vm151, %v906, 0.0
  %v1271 = vrot.slane %v1270, 4
  %v1272 = vadd.f32 %v1270, %v1271
  %v1273 = vrot.slane %v1272, 2
  %v1274 = vadd.f32 %v1272, %v1273
  %v1275 = vrot.slane %v1274, 1
  %v1276 = vadd.f32 %v1274, %v1275
  %v1277 = vsel %vm151, %v907, 0.0
  %v1278 = vrot.slane %v1277, 4
  %v1279 = vadd.f32 %v1277, %v1278
  %v1280 = vrot.slane %v1279, 2
  %v1281 = vadd.f32 %v1279, %v1280
  %v1282 = vrot.slane %v1281, 1
  %v1283 = vadd.f32 %v1281, %v1282
  %v1284 = vsel %vm151, %v908, 0.0
  %v1285 = vrot.slane %v1284, 4
  %v1286 = vadd.f32 %v1284, %v1285
  %v1287 = vrot.slane %v1286, 2
  %v1288 = vadd.f32 %v1286, %v1287
  %v1289 = vrot.slane %v1288, 1
  %v1290 = vadd.f32 %v1288, %v1289
  %v1291 = vsel %vm151, %v909, 0.0
  %v1292 = vrot.slane %v1291, 4
  %v1293 = vadd.f32 %v1291, %v1292
  %v1294 = vrot.slane %v1293, 2
  %v1295 = vadd.f32 %v1293, %v1294
  %v1296 = vrot.slane %v1295, 1
  %v1297 = vadd.f32 %v1295, %v1296
  %v1298 = vsel %vm151, %v910, 0.0
  %v1299 = vrot.slane %v1298, 4
  %v1300 = vadd.f32 %v1298, %v1299
  %v1301 = vrot.slane %v1300, 2
  %v1302 = vadd.f32 %v1300, %v1301
  %v1303 = vrot.slane %v1302, 1
  %v1304 = vadd.f32 %v1302, %v1303
  %v1305 = vsel %vm151, %v911, 0.0
  %v1306 = vrot.slane %v1305, 4
  %v1307 = vadd.f32 %v1305, %v1306
  %v1308 = vrot.slane %v1307, 2
  %v1309 = vadd.f32 %v1307, %v1308
  %v1310 = vrot.slane %v1309, 1
  %v1311 = vadd.f32 %v1309, %v1310
  %v1312 = vsel %vm151, %v912, 0.0
  %v1313 = vrot.slane %v1312, 4
  %v1314 = vadd.f32 %v1312, %v1313
  %v1315 = vrot.slane %v1314, 2
  %v1316 = vadd.f32 %v1314, %v1315
  %v1317 = vrot.slane %v1316, 1
  %v1318 = vadd.f32 %v1316, %v1317
  %v1319 = vsel %vm151, %v913, 0.0
  %v1320 = vrot.slane %v1319, 4
  %v1321 = vadd.f32 %v1319, %v1320
  %v1322 = vrot.slane %v1321, 2
  %v1323 = vadd.f32 %v1321, %v1322
  %v1324 = vrot.slane %v1323, 1
  %v1325 = vadd.f32 %v1323, %v1324
  %v1326 = vsel %vm151, %v914, 0.0
  %v1327 = vrot.slane %v1326, 4
  %v1328 = vadd.f32 %v1326, %v1327
  %v1329 = vrot.slane %v1328, 2
  %v1330 = vadd.f32 %v1328, %v1329
  %v1331 = vrot.slane %v1330, 1
  %v1332 = vadd.f32 %v1330, %v1331
  %v1333 = vsel %vm151, %v915, 0.0
  %v1334 = vrot.slane %v1333, 4
  %v1335 = vadd.f32 %v1333, %v1334
  %v1336 = vrot.slane %v1335, 2
  %v1337 = vadd.f32 %v1335, %v1336
  %v1338 = vrot.slane %v1337, 1
  %v1339 = vadd.f32 %v1337, %v1338
  %v1340 = vsel %vm151, %v916, 0.0
  %v1341 = vrot.slane %v1340, 4
  %v1342 = vadd.f32 %v1340, %v1341
  %v1343 = vrot.slane %v1342, 2
  %v1344 = vadd.f32 %v1342, %v1343
  %v1345 = vrot.slane %v1344, 1
  %v1346 = vadd.f32 %v1344, %v1345
  %v1347 = vsel %vm151, %v917, 0.0
  %v1348 = vrot.slane %v1347, 4
  %v1349 = vadd.f32 %v1347, %v1348
  %v1350 = vrot.slane %v1349, 2
  %v1351 = vadd.f32 %v1349, %v1350
  %v1352 = vrot.slane %v1351, 1
  %v1353 = vadd.f32 %v1351, %v1352
  %v1354 = vsel %vm151, %v918, 0.0
  %v1355 = vrot.slane %v1354, 4
  %v1356 = vadd.f32 %v1354, %v1355
  %v1357 = vrot.slane %v1356, 2
  %v1358 = vadd.f32 %v1356, %v1357
  %v1359 = vrot.slane %v1358, 1
  %v1360 = vadd.f32 %v1358, %v1359
  %v1361 = vsel %vm151, %v919, 0.0
  %v1362 = vrot.slane %v1361, 4
  %v1363 = vadd.f32 %v1361, %v1362
  %v1364 = vrot.slane %v1363, 2
  %v1365 = vadd.f32 %v1363, %v1364
  %v1366 = vrot.slane %v1365, 1
  %v1367 = vadd.f32 %v1365, %v1366
  %1369 = vbcast.lane.b32.xlu0 %v926, 256
  %v1370 = vpop.permute.xlu0 %1369
  %1372 = vbcast.lane.b32.xlu0 %v933, 256
  %v1373 = vpop.permute.xlu0 %1372
  %1375 = vbcast.lane.b32.xlu0 %v940, 256
  %v1376 = vpop.permute.xlu0 %1375
  %1378 = vbcast.lane.b32.xlu0 %v947, 256
  %v1379 = vpop.permute.xlu0 %1378
  %1381 = vbcast.lane.b32.xlu0 %v954, 256
  %v1382 = vpop.permute.xlu0 %1381
  %1384 = vbcast.lane.b32.xlu0 %v961, 256
  %v1385 = vpop.permute.xlu0 %1384
  %1387 = vbcast.lane.b32.xlu0 %v968, 256
  %v1388 = vpop.permute.xlu0 %1387
  %1390 = vbcast.lane.b32.xlu0 %v975, 256
  %v1391 = vpop.permute.xlu0 %1390
  %1393 = vbcast.lane.b32.xlu0 %v982, 256
  %v1394 = vpop.permute.xlu0 %1393
  %1396 = vbcast.lane.b32.xlu0 %v989, 256
  %v1397 = vpop.permute.xlu0 %1396
  %1399 = vbcast.lane.b32.xlu0 %v996, 256
  %v1400 = vpop.permute.xlu0 %1399
  %1402 = vbcast.lane.b32.xlu0 %v1003, 256
  %v1403 = vpop.permute.xlu0 %1402
  %1405 = vbcast.lane.b32.xlu0 %v1010, 256
  %v1406 = vpop.permute.xlu0 %1405
  %1408 = vbcast.lane.b32.xlu0 %v1017, 256
  %v1409 = vpop.permute.xlu0 %1408
  %1411 = vbcast.lane.b32.xlu0 %v1024, 256
  %v1412 = vpop.permute.xlu0 %1411
  %1414 = vbcast.lane.b32.xlu0 %v1031, 256
  %v1415 = vpop.permute.xlu0 %1414
  %1417 = vbcast.lane.b32.xlu0 %v1038, 256
  %v1418 = vpop.permute.xlu0 %1417
  %1420 = vbcast.lane.b32.xlu0 %v1045, 256
  %v1421 = vpop.permute.xlu0 %1420
  %1423 = vbcast.lane.b32.xlu0 %v1052, 256
  %v1424 = vpop.permute.xlu0 %1423
  %1426 = vbcast.lane.b32.xlu0 %v1059, 256
  %v1427 = vpop.permute.xlu0 %1426
  %1429 = vbcast.lane.b32.xlu0 %v1066, 256
  %v1430 = vpop.permute.xlu0 %1429
  %1432 = vbcast.lane.b32.xlu0 %v1073, 256
  %v1433 = vpop.permute.xlu0 %1432
  %1435 = vbcast.lane.b32.xlu0 %v1080, 256
  %v1436 = vpop.permute.xlu0 %1435
  %1438 = vbcast.lane.b32.xlu0 %v1087, 256
  %v1439 = vpop.permute.xlu0 %1438
  %1441 = vbcast.lane.b32.xlu0 %v1094, 256
  %v1442 = vpop.permute.xlu0 %1441
  %1444 = vbcast.lane.b32.xlu0 %v1101, 256
  %v1445 = vpop.permute.xlu0 %1444
  %1447 = vbcast.lane.b32.xlu0 %v1108, 256
  %v1448 = vpop.permute.xlu0 %1447
  %1450 = vbcast.lane.b32.xlu0 %v1115, 256
  %v1451 = vpop.permute.xlu0 %1450
  %1453 = vbcast.lane.b32.xlu0 %v1122, 256
  %v1454 = vpop.permute.xlu0 %1453
  %1456 = vbcast.lane.b32.xlu0 %v1129, 256
  %v1457 = vpop.permute.xlu0 %1456
  %1459 = vbcast.lane.b32.xlu0 %v1136, 256
  %v1460 = vpop.permute.xlu0 %1459
  %1462 = vbcast.lane.b32.xlu0 %v1143, 256
  %v1463 = vpop.permute.xlu0 %1462
  %1465 = vbcast.lane.b32.xlu0 %v1150, 256
  %v1466 = vpop.permute.xlu0 %1465
  %1468 = vbcast.lane.b32.xlu0 %v1157, 256
  %v1469 = vpop.permute.xlu0 %1468
  %1471 = vbcast.lane.b32.xlu0 %v1164, 256
  %v1472 = vpop.permute.xlu0 %1471
  %1474 = vbcast.lane.b32.xlu0 %v1171, 256
  %v1475 = vpop.permute.xlu0 %1474
  %1477 = vbcast.lane.b32.xlu0 %v1178, 256
  %v1478 = vpop.permute.xlu0 %1477
  %1480 = vbcast.lane.b32.xlu0 %v1185, 256
  %v1481 = vpop.permute.xlu0 %1480
  %1483 = vbcast.lane.b32.xlu0 %v1192, 256
  %v1484 = vpop.permute.xlu0 %1483
  %1486 = vbcast.lane.b32.xlu0 %v1199, 256
  %v1487 = vpop.permute.xlu0 %1486
  %1489 = vbcast.lane.b32.xlu0 %v1206, 256
  %v1490 = vpop.permute.xlu0 %1489
  %1492 = vbcast.lane.b32.xlu0 %v1213, 256
  %v1493 = vpop.permute.xlu0 %1492
  %1495 = vbcast.lane.b32.xlu0 %v1220, 256
  %v1496 = vpop.permute.xlu0 %1495
  %1498 = vbcast.lane.b32.xlu0 %v1227, 256
  %v1499 = vpop.permute.xlu0 %1498
  %1501 = vbcast.lane.b32.xlu0 %v1234, 256
  %v1502 = vpop.permute.xlu0 %1501
  %1504 = vbcast.lane.b32.xlu0 %v1241, 256
  %v1505 = vpop.permute.xlu0 %1504
  %1507 = vbcast.lane.b32.xlu0 %v1248, 256
  %v1508 = vpop.permute.xlu0 %1507
  %1510 = vbcast.lane.b32.xlu0 %v1255, 256
  %v1511 = vpop.permute.xlu0 %1510
  %1513 = vbcast.lane.b32.xlu0 %v1262, 256
  %v1514 = vpop.permute.xlu0 %1513
  %1516 = vbcast.lane.b32.xlu0 %v1269, 256
  %v1517 = vpop.permute.xlu0 %1516
  %1519 = vbcast.lane.b32.xlu0 %v1276, 256
  %v1520 = vpop.permute.xlu0 %1519
  %1522 = vbcast.lane.b32.xlu0 %v1283, 256
  %v1523 = vpop.permute.xlu0 %1522
  %1525 = vbcast.lane.b32.xlu0 %v1290, 256
  %v1526 = vpop.permute.xlu0 %1525
  %1528 = vbcast.lane.b32.xlu0 %v1297, 256
  %v1529 = vpop.permute.xlu0 %1528
  %1531 = vbcast.lane.b32.xlu0 %v1304, 256
  %v1532 = vpop.permute.xlu0 %1531
  %1534 = vbcast.lane.b32.xlu0 %v1311, 256
  %v1535 = vpop.permute.xlu0 %1534
  %1537 = vbcast.lane.b32.xlu0 %v1318, 256
  %v1538 = vpop.permute.xlu0 %1537
  %1540 = vbcast.lane.b32.xlu0 %v1325, 256
  %v1541 = vpop.permute.xlu0 %1540
  %1543 = vbcast.lane.b32.xlu0 %v1332, 256
  %v1544 = vpop.permute.xlu0 %1543
  %1546 = vbcast.lane.b32.xlu0 %v1339, 256
  %v1547 = vpop.permute.xlu0 %1546
  %1549 = vbcast.lane.b32.xlu0 %v1346, 256
  %v1550 = vpop.permute.xlu0 %1549
  %1552 = vbcast.lane.b32.xlu0 %v1353, 256
  %v1553 = vpop.permute.xlu0 %1552
  %1555 = vbcast.lane.b32.xlu0 %v1360, 256
  %v1556 = vpop.permute.xlu0 %1555
  %1558 = vbcast.lane.b32.xlu0 %v1367, 256
  %v1559 = vpop.permute.xlu0 %1558
  %v1560 = vmul.f32 %v1370, %v23
  %v1561 = vmul.f32 %v1373, %v24
  %v1562 = vmul.f32 %v1376, %v25
  %v1563 = vmul.f32 %v1379, %v26
  %v1564 = vmul.f32 %v1382, %v27
  %v1565 = vmul.f32 %v1385, %v28
  %v1566 = vmul.f32 %v1388, %v29
  %v1567 = vmul.f32 %v1391, %v30
  %v1568 = vmul.f32 %v1394, %v31
  %v1569 = vmul.f32 %v1397, %v32
  %v1570 = vmul.f32 %v1400, %v33
  %v1571 = vmul.f32 %v1403, %v34
  %v1572 = vmul.f32 %v1406, %v35
  %v1573 = vmul.f32 %v1409, %v36
  %v1574 = vmul.f32 %v1412, %v37
  %v1575 = vmul.f32 %v1415, %v38
  %v1576 = vmul.f32 %v1418, %v39
  %v1577 = vmul.f32 %v1421, %v40
  %v1578 = vmul.f32 %v1424, %v41
  %v1579 = vmul.f32 %v1427, %v42
  %v1580 = vmul.f32 %v1430, %v43
  %v1581 = vmul.f32 %v1433, %v44
  %v1582 = vmul.f32 %v1436, %v45
  %v1583 = vmul.f32 %v1439, %v46
  %v1584 = vmul.f32 %v1442, %v47
  %v1585 = vmul.f32 %v1445, %v48
  %v1586 = vmul.f32 %v1448, %v49
  %v1587 = vmul.f32 %v1451, %v50
  %v1588 = vmul.f32 %v1454, %v51
  %v1589 = vmul.f32 %v1457, %v52
  %v1590 = vmul.f32 %v1460, %v53
  %v1591 = vmul.f32 %v1463, %v54
  %v1592 = vmul.f32 %v1466, %v55
  %v1593 = vmul.f32 %v1469, %v56
  %v1594 = vmul.f32 %v1472, %v57
  %v1595 = vmul.f32 %v1475, %v58
  %v1596 = vmul.f32 %v1478, %v59
  %v1597 = vmul.f32 %v1481, %v60
  %v1598 = vmul.f32 %v1484, %v61
  %v1599 = vmul.f32 %v1487, %v62
  %v1600 = vmul.f32 %v1490, %v63
  %v1601 = vmul.f32 %v1493, %v64
  %v1602 = vmul.f32 %v1496, %v65
  %v1603 = vmul.f32 %v1499, %v66
  %v1604 = vmul.f32 %v1502, %v67
  %v1605 = vmul.f32 %v1505, %v68
  %v1606 = vmul.f32 %v1508, %v69
  %v1607 = vmul.f32 %v1511, %v70
  %v1608 = vmul.f32 %v1514, %v71
  %v1609 = vmul.f32 %v1517, %v72
  %v1610 = vmul.f32 %v1520, %v73
  %v1611 = vmul.f32 %v1523, %v74
  %v1612 = vmul.f32 %v1526, %v75
  %v1613 = vmul.f32 %v1529, %v76
  %v1614 = vmul.f32 %v1532, %v77
  %v1615 = vmul.f32 %v1535, %v78
  %v1616 = vmul.f32 %v1538, %v79
  %v1617 = vmul.f32 %v1541, %v80
  %v1618 = vmul.f32 %v1544, %v81
  %v1619 = vmul.f32 %v1547, %v82
  %v1620 = vmul.f32 %v1550, %v83
  %v1621 = vmul.f32 %v1553, %v84
  %v1622 = vmul.f32 %v1556, %v85
  %v1623 = vmul.f32 %v1559, %v86
  %vm1624 = vcmask 130048
  %v1625 = vsel %vm1624, %v1560, 0.0
  %v1626 = vrot.slane %v1625, 4
  %v1627 = vadd.f32 %v1625, %v1626
  %v1628 = vrot.slane %v1627, 2
  %v1629 = vadd.f32 %v1627, %v1628
  %v1630 = vrot.slane %v1629, 1
  %v1631 = vadd.f32 %v1629, %v1630
  %v1632 = vsel %vm1624, %v1561, 0.0
  %v1633 = vrot.slane %v1632, 4
  %v1634 = vadd.f32 %v1632, %v1633
  %v1635 = vrot.slane %v1634, 2
  %v1636 = vadd.f32 %v1634, %v1635
  %v1637 = vrot.slane %v1636, 1
  %v1638 = vadd.f32 %v1636, %v1637
  %v1639 = vsel %vm1624, %v1562, 0.0
  %v1640 = vrot.slane %v1639, 4
  %v1641 = vadd.f32 %v1639, %v1640
  %v1642 = vrot.slane %v1641, 2
  %v1643 = vadd.f32 %v1641, %v1642
  %v1644 = vrot.slane %v1643, 1
  %v1645 = vadd.f32 %v1643, %v1644
  %v1646 = vsel %vm1624, %v1563, 0.0
  %v1647 = vrot.slane %v1646, 4
  %v1648 = vadd.f32 %v1646, %v1647
  %v1649 = vrot.slane %v1648, 2
  %v1650 = vadd.f32 %v1648, %v1649
  %v1651 = vrot.slane %v1650, 1
  %v1652 = vadd.f32 %v1650, %v1651
  %v1653 = vsel %vm1624, %v1564, 0.0
  %v1654 = vrot.slane %v1653, 4
  %v1655 = vadd.f32 %v1653, %v1654
  %v1656 = vrot.slane %v1655, 2
  %v1657 = vadd.f32 %v1655, %v1656
  %v1658 = vrot.slane %v1657, 1
  %v1659 = vadd.f32 %v1657, %v1658
  %v1660 = vsel %vm1624, %v1565, 0.0
  %v1661 = vrot.slane %v1660, 4
  %v1662 = vadd.f32 %v1660, %v1661
  %v1663 = vrot.slane %v1662, 2
  %v1664 = vadd.f32 %v1662, %v1663
  %v1665 = vrot.slane %v1664, 1
  %v1666 = vadd.f32 %v1664, %v1665
  %v1667 = vsel %vm1624, %v1566, 0.0
  %v1668 = vrot.slane %v1667, 4
  %v1669 = vadd.f32 %v1667, %v1668
  %v1670 = vrot.slane %v1669, 2
  %v1671 = vadd.f32 %v1669, %v1670
  %v1672 = vrot.slane %v1671, 1
  %v1673 = vadd.f32 %v1671, %v1672
  %v1674 = vsel %vm1624, %v1567, 0.0
  %v1675 = vrot.slane %v1674, 4
  %v1676 = vadd.f32 %v1674, %v1675
  %v1677 = vrot.slane %v1676, 2
  %v1678 = vadd.f32 %v1676, %v1677
  %v1679 = vrot.slane %v1678, 1
  %v1680 = vadd.f32 %v1678, %v1679
  %v1681 = vsel %vm1624, %v1568, 0.0
  %v1682 = vrot.slane %v1681, 4
  %v1683 = vadd.f32 %v1681, %v1682
  %v1684 = vrot.slane %v1683, 2
  %v1685 = vadd.f32 %v1683, %v1684
  %v1686 = vrot.slane %v1685, 1
  %v1687 = vadd.f32 %v1685, %v1686
  %v1688 = vsel %vm1624, %v1569, 0.0
  %v1689 = vrot.slane %v1688, 4
  %v1690 = vadd.f32 %v1688, %v1689
  %v1691 = vrot.slane %v1690, 2
  %v1692 = vadd.f32 %v1690, %v1691
  %v1693 = vrot.slane %v1692, 1
  %v1694 = vadd.f32 %v1692, %v1693
  %v1695 = vsel %vm1624, %v1570, 0.0
  %v1696 = vrot.slane %v1695, 4
  %v1697 = vadd.f32 %v1695, %v1696
  %v1698 = vrot.slane %v1697, 2
  %v1699 = vadd.f32 %v1697, %v1698
  %v1700 = vrot.slane %v1699, 1
  %v1701 = vadd.f32 %v1699, %v1700
  %v1702 = vsel %vm1624, %v1571, 0.0
  %v1703 = vrot.slane %v1702, 4
  %v1704 = vadd.f32 %v1702, %v1703
  %v1705 = vrot.slane %v1704, 2
  %v1706 = vadd.f32 %v1704, %v1705
  %v1707 = vrot.slane %v1706, 1
  %v1708 = vadd.f32 %v1706, %v1707
  %v1709 = vsel %vm1624, %v1572, 0.0
  %v1710 = vrot.slane %v1709, 4
  %v1711 = vadd.f32 %v1709, %v1710
  %v1712 = vrot.slane %v1711, 2
  %v1713 = vadd.f32 %v1711, %v1712
  %v1714 = vrot.slane %v1713, 1
  %v1715 = vadd.f32 %v1713, %v1714
  %v1716 = vsel %vm1624, %v1573, 0.0
  %v1717 = vrot.slane %v1716, 4
  %v1718 = vadd.f32 %v1716, %v1717
  %v1719 = vrot.slane %v1718, 2
  %v1720 = vadd.f32 %v1718, %v1719
  %v1721 = vrot.slane %v1720, 1
  %v1722 = vadd.f32 %v1720, %v1721
  %v1723 = vsel %vm1624, %v1574, 0.0
  %v1724 = vrot.slane %v1723, 4
  %v1725 = vadd.f32 %v1723, %v1724
  %v1726 = vrot.slane %v1725, 2
  %v1727 = vadd.f32 %v1725, %v1726
  %v1728 = vrot.slane %v1727, 1
  %v1729 = vadd.f32 %v1727, %v1728
  %v1730 = vsel %vm1624, %v1575, 0.0
  %v1731 = vrot.slane %v1730, 4
  %v1732 = vadd.f32 %v1730, %v1731
  %v1733 = vrot.slane %v1732, 2
  %v1734 = vadd.f32 %v1732, %v1733
  %v1735 = vrot.slane %v1734, 1
  %v1736 = vadd.f32 %v1734, %v1735
  %v1737 = vsel %vm1624, %v1576, 0.0
  %v1738 = vrot.slane %v1737, 4
  %v1739 = vadd.f32 %v1737, %v1738
  %v1740 = vrot.slane %v1739, 2
  %v1741 = vadd.f32 %v1739, %v1740
  %v1742 = vrot.slane %v1741, 1
  %v1743 = vadd.f32 %v1741, %v1742
  %v1744 = vsel %vm1624, %v1577, 0.0
  %v1745 = vrot.slane %v1744, 4
  %v1746 = vadd.f32 %v1744, %v1745
  %v1747 = vrot.slane %v1746, 2
  %v1748 = vadd.f32 %v1746, %v1747
  %v1749 = vrot.slane %v1748, 1
  %v1750 = vadd.f32 %v1748, %v1749
  %v1751 = vsel %vm1624, %v1578, 0.0
  %v1752 = vrot.slane %v1751, 4
  %v1753 = vadd.f32 %v1751, %v1752
  %v1754 = vrot.slane %v1753, 2
  %v1755 = vadd.f32 %v1753, %v1754
  %v1756 = vrot.slane %v1755, 1
  %v1757 = vadd.f32 %v1755, %v1756
  %v1758 = vsel %vm1624, %v1579, 0.0
  %v1759 = vrot.slane %v1758, 4
  %v1760 = vadd.f32 %v1758, %v1759
  %v1761 = vrot.slane %v1760, 2
  %v1762 = vadd.f32 %v1760, %v1761
  %v1763 = vrot.slane %v1762, 1
  %v1764 = vadd.f32 %v1762, %v1763
  %v1765 = vsel %vm1624, %v1580, 0.0
  %v1766 = vrot.slane %v1765, 4
  %v1767 = vadd.f32 %v1765, %v1766
  %v1768 = vrot.slane %v1767, 2
  %v1769 = vadd.f32 %v1767, %v1768
  %v1770 = vrot.slane %v1769, 1
  %v1771 = vadd.f32 %v1769, %v1770
  %v1772 = vsel %vm1624, %v1581, 0.0
  %v1773 = vrot.slane %v1772, 4
  %v1774 = vadd.f32 %v1772, %v1773
  %v1775 = vrot.slane %v1774, 2
  %v1776 = vadd.f32 %v1774, %v1775
  %v1777 = vrot.slane %v1776, 1
  %v1778 = vadd.f32 %v1776, %v1777
  %v1779 = vsel %vm1624, %v1582, 0.0
  %v1780 = vrot.slane %v1779, 4
  %v1781 = vadd.f32 %v1779, %v1780
  %v1782 = vrot.slane %v1781, 2
  %v1783 = vadd.f32 %v1781, %v1782
  %v1784 = vrot.slane %v1783, 1
  %v1785 = vadd.f32 %v1783, %v1784
  %v1786 = vsel %vm1624, %v1583, 0.0
  %v1787 = vrot.slane %v1786, 4
  %v1788 = vadd.f32 %v1786, %v1787
  %v1789 = vrot.slane %v1788, 2
  %v1790 = vadd.f32 %v1788, %v1789
  %v1791 = vrot.slane %v1790, 1
  %v1792 = vadd.f32 %v1790, %v1791
  %v1793 = vsel %vm1624, %v1584, 0.0
  %v1794 = vrot.slane %v1793, 4
  %v1795 = vadd.f32 %v1793, %v1794
  %v1796 = vrot.slane %v1795, 2
  %v1797 = vadd.f32 %v1795, %v1796
  %v1798 = vrot.slane %v1797, 1
  %v1799 = vadd.f32 %v1797, %v1798
  %v1800 = vsel %vm1624, %v1585, 0.0
  %v1801 = vrot.slane %v1800, 4
  %v1802 = vadd.f32 %v1800, %v1801
  %v1803 = vrot.slane %v1802, 2
  %v1804 = vadd.f32 %v1802, %v1803
  %v1805 = vrot.slane %v1804, 1
  %v1806 = vadd.f32 %v1804, %v1805
  %v1807 = vsel %vm1624, %v1586, 0.0
  %v1808 = vrot.slane %v1807, 4
  %v1809 = vadd.f32 %v1807, %v1808
  %v1810 = vrot.slane %v1809, 2
  %v1811 = vadd.f32 %v1809, %v1810
  %v1812 = vrot.slane %v1811, 1
  %v1813 = vadd.f32 %v1811, %v1812
  %v1814 = vsel %vm1624, %v1587, 0.0
  %v1815 = vrot.slane %v1814, 4
  %v1816 = vadd.f32 %v1814, %v1815
  %v1817 = vrot.slane %v1816, 2
  %v1818 = vadd.f32 %v1816, %v1817
  %v1819 = vrot.slane %v1818, 1
  %v1820 = vadd.f32 %v1818, %v1819
  %v1821 = vsel %vm1624, %v1588, 0.0
  %v1822 = vrot.slane %v1821, 4
  %v1823 = vadd.f32 %v1821, %v1822
  %v1824 = vrot.slane %v1823, 2
  %v1825 = vadd.f32 %v1823, %v1824
  %v1826 = vrot.slane %v1825, 1
  %v1827 = vadd.f32 %v1825, %v1826
  %v1828 = vsel %vm1624, %v1589, 0.0
  %v1829 = vrot.slane %v1828, 4
  %v1830 = vadd.f32 %v1828, %v1829
  %v1831 = vrot.slane %v1830, 2
  %v1832 = vadd.f32 %v1830, %v1831
  %v1833 = vrot.slane %v1832, 1
  %v1834 = vadd.f32 %v1832, %v1833
  %v1835 = vsel %vm1624, %v1590, 0.0
  %v1836 = vrot.slane %v1835, 4
  %v1837 = vadd.f32 %v1835, %v1836
  %v1838 = vrot.slane %v1837, 2
  %v1839 = vadd.f32 %v1837, %v1838
  %v1840 = vrot.slane %v1839, 1
  %v1841 = vadd.f32 %v1839, %v1840
  %v1842 = vsel %vm1624, %v1591, 0.0
  %v1843 = vrot.slane %v1842, 4
  %v1844 = vadd.f32 %v1842, %v1843
  %v1845 = vrot.slane %v1844, 2
  %v1846 = vadd.f32 %v1844, %v1845
  %v1847 = vrot.slane %v1846, 1
  %v1848 = vadd.f32 %v1846, %v1847
  %v1849 = vsel %vm1624, %v1592, 0.0
  %v1850 = vrot.slane %v1849, 4
  %v1851 = vadd.f32 %v1849, %v1850
  %v1852 = vrot.slane %v1851, 2
  %v1853 = vadd.f32 %v1851, %v1852
  %v1854 = vrot.slane %v1853, 1
  %v1855 = vadd.f32 %v1853, %v1854
  %v1856 = vsel %vm1624, %v1593, 0.0
  %v1857 = vrot.slane %v1856, 4
  %v1858 = vadd.f32 %v1856, %v1857
  %v1859 = vrot.slane %v1858, 2
  %v1860 = vadd.f32 %v1858, %v1859
  %v1861 = vrot.slane %v1860, 1
  %v1862 = vadd.f32 %v1860, %v1861
  %v1863 = vsel %vm1624, %v1594, 0.0
  %v1864 = vrot.slane %v1863, 4
  %v1865 = vadd.f32 %v1863, %v1864
  %v1866 = vrot.slane %v1865, 2
  %v1867 = vadd.f32 %v1865, %v1866
  %v1868 = vrot.slane %v1867, 1
  %v1869 = vadd.f32 %v1867, %v1868
  %v1870 = vsel %vm1624, %v1595, 0.0
  %v1871 = vrot.slane %v1870, 4
  %v1872 = vadd.f32 %v1870, %v1871
  %v1873 = vrot.slane %v1872, 2
  %v1874 = vadd.f32 %v1872, %v1873
  %v1875 = vrot.slane %v1874, 1
  %v1876 = vadd.f32 %v1874, %v1875
  %v1877 = vsel %vm1624, %v1596, 0.0
  %v1878 = vrot.slane %v1877, 4
  %v1879 = vadd.f32 %v1877, %v1878
  %v1880 = vrot.slane %v1879, 2
  %v1881 = vadd.f32 %v1879, %v1880
  %v1882 = vrot.slane %v1881, 1
  %v1883 = vadd.f32 %v1881, %v1882
  %v1884 = vsel %vm1624, %v1597, 0.0
  %v1885 = vrot.slane %v1884, 4
  %v1886 = vadd.f32 %v1884, %v1885
  %v1887 = vrot.slane %v1886, 2
  %v1888 = vadd.f32 %v1886, %v1887
  %v1889 = vrot.slane %v1888, 1
  %v1890 = vadd.f32 %v1888, %v1889
  %v1891 = vsel %vm1624, %v1598, 0.0
  %v1892 = vrot.slane %v1891, 4
  %v1893 = vadd.f32 %v1891, %v1892
  %v1894 = vrot.slane %v1893, 2
  %v1895 = vadd.f32 %v1893, %v1894
  %v1896 = vrot.slane %v1895, 1
  %v1897 = vadd.f32 %v1895, %v1896
  %v1898 = vsel %vm1624, %v1599, 0.0
  %v1899 = vrot.slane %v1898, 4
  %v1900 = vadd.f32 %v1898, %v1899
  %v1901 = vrot.slane %v1900, 2
  %v1902 = vadd.f32 %v1900, %v1901
  %v1903 = vrot.slane %v1902, 1
  %v1904 = vadd.f32 %v1902, %v1903
  %v1905 = vsel %vm1624, %v1600, 0.0
  %v1906 = vrot.slane %v1905, 4
  %v1907 = vadd.f32 %v1905, %v1906
  %v1908 = vrot.slane %v1907, 2
  %v1909 = vadd.f32 %v1907, %v1908
  %v1910 = vrot.slane %v1909, 1
  %v1911 = vadd.f32 %v1909, %v1910
  %v1912 = vsel %vm1624, %v1601, 0.0
  %v1913 = vrot.slane %v1912, 4
  %v1914 = vadd.f32 %v1912, %v1913
  %v1915 = vrot.slane %v1914, 2
  %v1916 = vadd.f32 %v1914, %v1915
  %v1917 = vrot.slane %v1916, 1
  %v1918 = vadd.f32 %v1916, %v1917
  %v1919 = vsel %vm1624, %v1602, 0.0
  %v1920 = vrot.slane %v1919, 4
  %v1921 = vadd.f32 %v1919, %v1920
  %v1922 = vrot.slane %v1921, 2
  %v1923 = vadd.f32 %v1921, %v1922
  %v1924 = vrot.slane %v1923, 1
  %v1925 = vadd.f32 %v1923, %v1924
  %v1926 = vsel %vm1624, %v1603, 0.0
  %v1927 = vrot.slane %v1926, 4
  %v1928 = vadd.f32 %v1926, %v1927
  %v1929 = vrot.slane %v1928, 2
  %v1930 = vadd.f32 %v1928, %v1929
  %v1931 = vrot.slane %v1930, 1
  %v1932 = vadd.f32 %v1930, %v1931
  %v1933 = vsel %vm1624, %v1604, 0.0
  %v1934 = vrot.slane %v1933, 4
  %v1935 = vadd.f32 %v1933, %v1934
  %v1936 = vrot.slane %v1935, 2
  %v1937 = vadd.f32 %v1935, %v1936
  %v1938 = vrot.slane %v1937, 1
  %v1939 = vadd.f32 %v1937, %v1938
  %v1940 = vsel %vm1624, %v1605, 0.0
  %v1941 = vrot.slane %v1940, 4
  %v1942 = vadd.f32 %v1940, %v1941
  %v1943 = vrot.slane %v1942, 2
  %v1944 = vadd.f32 %v1942, %v1943
  %v1945 = vrot.slane %v1944, 1
  %v1946 = vadd.f32 %v1944, %v1945
  %v1947 = vsel %vm1624, %v1606, 0.0
  %v1948 = vrot.slane %v1947, 4
  %v1949 = vadd.f32 %v1947, %v1948
  %v1950 = vrot.slane %v1949, 2
  %v1951 = vadd.f32 %v1949, %v1950
  %v1952 = vrot.slane %v1951, 1
  %v1953 = vadd.f32 %v1951, %v1952
  %v1954 = vsel %vm1624, %v1607, 0.0
  %v1955 = vrot.slane %v1954, 4
  %v1956 = vadd.f32 %v1954, %v1955
  %v1957 = vrot.slane %v1956, 2
  %v1958 = vadd.f32 %v1956, %v1957
  %v1959 = vrot.slane %v1958, 1
  %v1960 = vadd.f32 %v1958, %v1959
  %v1961 = vsel %vm1624, %v1608, 0.0
  %v1962 = vrot.slane %v1961, 4
  %v1963 = vadd.f32 %v1961, %v1962
  %v1964 = vrot.slane %v1963, 2
  %v1965 = vadd.f32 %v1963, %v1964
  %v1966 = vrot.slane %v1965, 1
  %v1967 = vadd.f32 %v1965, %v1966
  %v1968 = vsel %vm1624, %v1609, 0.0
  %v1969 = vrot.slane %v1968, 4
  %v1970 = vadd.f32 %v1968, %v1969
  %v1971 = vrot.slane %v1970, 2
  %v1972 = vadd.f32 %v1970, %v1971
  %v1973 = vrot.slane %v1972, 1
  %v1974 = vadd.f32 %v1972, %v1973
  %v1975 = vsel %vm1624, %v1610, 0.0
  %v1976 = vrot.slane %v1975, 4
  %v1977 = vadd.f32 %v1975, %v1976
  %v1978 = vrot.slane %v1977, 2
  %v1979 = vadd.f32 %v1977, %v1978
  %v1980 = vrot.slane %v1979, 1
  %v1981 = vadd.f32 %v1979, %v1980
  %v1982 = vsel %vm1624, %v1611, 0.0
  %v1983 = vrot.slane %v1982, 4
  %v1984 = vadd.f32 %v1982, %v1983
  %v1985 = vrot.slane %v1984, 2
  %v1986 = vadd.f32 %v1984, %v1985
  %v1987 = vrot.slane %v1986, 1
  %v1988 = vadd.f32 %v1986, %v1987
  %v1989 = vsel %vm1624, %v1612, 0.0
  %v1990 = vrot.slane %v1989, 4
  %v1991 = vadd.f32 %v1989, %v1990
  %v1992 = vrot.slane %v1991, 2
  %v1993 = vadd.f32 %v1991, %v1992
  %v1994 = vrot.slane %v1993, 1
  %v1995 = vadd.f32 %v1993, %v1994
  %v1996 = vsel %vm1624, %v1613, 0.0
  %v1997 = vrot.slane %v1996, 4
  %v1998 = vadd.f32 %v1996, %v1997
  %v1999 = vrot.slane %v1998, 2
  %v2000 = vadd.f32 %v1998, %v1999
  %v2001 = vrot.slane %v2000, 1
  %v2002 = vadd.f32 %v2000, %v2001
  %v2003 = vsel %vm1624, %v1614, 0.0
  %v2004 = vrot.slane %v2003, 4
  %v2005 = vadd.f32 %v2003, %v2004
  %v2006 = vrot.slane %v2005, 2
  %v2007 = vadd.f32 %v2005, %v2006
  %v2008 = vrot.slane %v2007, 1
  %v2009 = vadd.f32 %v2007, %v2008
  %v2010 = vsel %vm1624, %v1615, 0.0
  %v2011 = vrot.slane %v2010, 4
  %v2012 = vadd.f32 %v2010, %v2011
  %v2013 = vrot.slane %v2012, 2
  %v2014 = vadd.f32 %v2012, %v2013
  %v2015 = vrot.slane %v2014, 1
  %v2016 = vadd.f32 %v2014, %v2015
  %v2017 = vsel %vm1624, %v1616, 0.0
  %v2018 = vrot.slane %v2017, 4
  %v2019 = vadd.f32 %v2017, %v2018
  %v2020 = vrot.slane %v2019, 2
  %v2021 = vadd.f32 %v2019, %v2020
  %v2022 = vrot.slane %v2021, 1
  %v2023 = vadd.f32 %v2021, %v2022
  %v2024 = vsel %vm1624, %v1617, 0.0
  %v2025 = vrot.slane %v2024, 4
  %v2026 = vadd.f32 %v2024, %v2025
  %v2027 = vrot.slane %v2026, 2
  %v2028 = vadd.f32 %v2026, %v2027
  %v2029 = vrot.slane %v2028, 1
  %v2030 = vadd.f32 %v2028, %v2029
  %v2031 = vsel %vm1624, %v1618, 0.0
  %v2032 = vrot.slane %v2031, 4
  %v2033 = vadd.f32 %v2031, %v2032
  %v2034 = vrot.slane %v2033, 2
  %v2035 = vadd.f32 %v2033, %v2034
  %v2036 = vrot.slane %v2035, 1
  %v2037 = vadd.f32 %v2035, %v2036
  %v2038 = vsel %vm1624, %v1619, 0.0
  %v2039 = vrot.slane %v2038, 4
  %v2040 = vadd.f32 %v2038, %v2039
  %v2041 = vrot.slane %v2040, 2
  %v2042 = vadd.f32 %v2040, %v2041
  %v2043 = vrot.slane %v2042, 1
  %v2044 = vadd.f32 %v2042, %v2043
  %v2045 = vsel %vm1624, %v1620, 0.0
  %v2046 = vrot.slane %v2045, 4
  %v2047 = vadd.f32 %v2045, %v2046
  %v2048 = vrot.slane %v2047, 2
  %v2049 = vadd.f32 %v2047, %v2048
  %v2050 = vrot.slane %v2049, 1
  %v2051 = vadd.f32 %v2049, %v2050
  %v2052 = vsel %vm1624, %v1621, 0.0
  %v2053 = vrot.slane %v2052, 4
  %v2054 = vadd.f32 %v2052, %v2053
  %v2055 = vrot.slane %v2054, 2
  %v2056 = vadd.f32 %v2054, %v2055
  %v2057 = vrot.slane %v2056, 1
  %v2058 = vadd.f32 %v2056, %v2057
  %v2059 = vsel %vm1624, %v1622, 0.0
  %v2060 = vrot.slane %v2059, 4
  %v2061 = vadd.f32 %v2059, %v2060
  %v2062 = vrot.slane %v2061, 2
  %v2063 = vadd.f32 %v2061, %v2062
  %v2064 = vrot.slane %v2063, 1
  %v2065 = vadd.f32 %v2063, %v2064
  %v2066 = vsel %vm1624, %v1623, 0.0
  %v2067 = vrot.slane %v2066, 4
  %v2068 = vadd.f32 %v2066, %v2067
  %v2069 = vrot.slane %v2068, 2
  %v2070 = vadd.f32 %v2068, %v2069
  %v2071 = vrot.slane %v2070, 1
  %v2072 = vadd.f32 %v2070, %v2071
  %vm2137 = vcmask 1041409
  %v2138 = vsel %vm2137, %v601, %v600
  %vm2139 = vcmask 1042434
  %v2140 = vsel %vm2139, %v602, %v2138
  %vm2141 = vcmask 1043459
  %v2142 = vsel %vm2141, %v603, %v2140
  %vm2143 = vcmask 1044484
  %v2144 = vsel %vm2143, %v604, %v2142
  %vm2145 = vcmask 1045509
  %v2146 = vsel %vm2145, %v605, %v2144
  %vm2147 = vcmask 1046534
  %v2148 = vsel %vm2147, %v606, %v2146
  %vm2149 = vcmask 1047559
  %v2150 = vsel %vm2149, %v607, %v2148
  %v2151 = vsel %vm2137, %v609, %v608
  %v2152 = vsel %vm2139, %v610, %v2151
  %v2153 = vsel %vm2141, %v611, %v2152
  %v2154 = vsel %vm2143, %v612, %v2153
  %v2155 = vsel %vm2145, %v613, %v2154
  %v2156 = vsel %vm2147, %v614, %v2155
  %v2157 = vsel %vm2149, %v615, %v2156
  %v2158 = vsel %vm2137, %v617, %v616
  %v2159 = vsel %vm2139, %v618, %v2158
  %v2160 = vsel %vm2141, %v619, %v2159
  %v2161 = vsel %vm2143, %v620, %v2160
  %v2162 = vsel %vm2145, %v621, %v2161
  %v2163 = vsel %vm2147, %v622, %v2162
  %v2164 = vsel %vm2149, %v623, %v2163
  %v2165 = vsel %vm2137, %v625, %v624
  %v2166 = vsel %vm2139, %v626, %v2165
  %v2167 = vsel %vm2141, %v627, %v2166
  %v2168 = vsel %vm2143, %v628, %v2167
  %v2169 = vsel %vm2145, %v629, %v2168
  %v2170 = vsel %vm2147, %v630, %v2169
  %v2171 = vsel %vm2149, %v631, %v2170
  %v2172 = vsel %vm2137, %v633, %v632
  %v2173 = vsel %vm2139, %v634, %v2172
  %v2174 = vsel %vm2141, %v635, %v2173
  %v2175 = vsel %vm2143, %v636, %v2174
  %v2176 = vsel %vm2145, %v637, %v2175
  %v2177 = vsel %vm2147, %v638, %v2176
  %v2178 = vsel %vm2149, %v639, %v2177
  %v2179 = vsel %vm2137, %v641, %v640
  %v2180 = vsel %vm2139, %v642, %v2179
  %v2181 = vsel %vm2141, %v643, %v2180
  %v2182 = vsel %vm2143, %v644, %v2181
  %v2183 = vsel %vm2145, %v645, %v2182
  %v2184 = vsel %vm2147, %v646, %v2183
  %v2185 = vsel %vm2149, %v647, %v2184
  %v2186 = vsel %vm2137, %v649, %v648
  %v2187 = vsel %vm2139, %v650, %v2186
  %v2188 = vsel %vm2141, %v651, %v2187
  %v2189 = vsel %vm2143, %v652, %v2188
  %v2190 = vsel %vm2145, %v653, %v2189
  %v2191 = vsel %vm2147, %v654, %v2190
  %v2192 = vsel %vm2149, %v655, %v2191
  %v2193 = vsel %vm2137, %v657, %v656
  %v2194 = vsel %vm2139, %v658, %v2193
  %v2195 = vsel %vm2141, %v659, %v2194
  %v2196 = vsel %vm2143, %v660, %v2195
  %v2197 = vsel %vm2145, %v661, %v2196
  %v2198 = vsel %vm2147, %v662, %v2197
  %v2199 = vsel %vm2149, %v663, %v2198
  %v2208 = vsel %vm151, %v2150, 0.0
  %2209 = vadd.xlane.f32.xlu0 %v2208
  %v2210 = vpop.xlane.xlu0 %2209
  %v2211 = vsel %vm151, %v2157, 0.0
  %2212 = vadd.xlane.f32.xlu0 %v2211
  %v2213 = vpop.xlane.xlu0 %2212
  %v2214 = vsel %vm151, %v2164, 0.0
  %2215 = vadd.xlane.f32.xlu0 %v2214
  %v2216 = vpop.xlane.xlu0 %2215
  %v2217 = vsel %vm151, %v2171, 0.0
  %2218 = vadd.xlane.f32.xlu0 %v2217
  %v2219 = vpop.xlane.xlu0 %2218
  %v2220 = vsel %vm151, %v2178, 0.0
  %2221 = vadd.xlane.f32.xlu0 %v2220
  %v2222 = vpop.xlane.xlu0 %2221
  %v2223 = vsel %vm151, %v2185, 0.0
  %2224 = vadd.xlane.f32.xlu0 %v2223
  %v2225 = vpop.xlane.xlu0 %2224
  %v2226 = vsel %vm151, %v2192, 0.0
  %2227 = vadd.xlane.f32.xlu0 %v2226
  %v2228 = vpop.xlane.xlu0 %2227
  %v2229 = vsel %vm151, %v2199, 0.0
  %2230 = vadd.xlane.f32.xlu0 %v2229
  %v2231 = vpop.xlane.xlu0 %2230
  %v2232 = vld [vmem:[%s2] sm:$0xff]
  %v2233 = vld [vmem:[%s2 + $0x8] sm:$0xff]
  %v2234 = vld [vmem:[%s3] sm:$0x1]
  %v2236 = vlaneseq
  %v2237 = vshrl.u32 %v2236, 7
  %v2238 = vsub.s32 0, %v2237
  %v2239 = vrot.slane %v2234, %v2238
  %v2241 = vmul.f32 %v2210, %v2239
  %v2242 = vmul.f32 %v2213, %v2239
  %v2243 = vmul.f32 %v2216, %v2239
  %v2244 = vmul.f32 %v2219, %v2239
  %v2245 = vmul.f32 %v2222, %v2239
  %v2246 = vmul.f32 %v2225, %v2239
  %v2247 = vmul.f32 %v2228, %v2239
  %v2248 = vmul.f32 %v2231, %v2239
  %v2313 = vsel %vm2137, %v1638, %v1631
  %v2314 = vsel %vm2139, %v1645, %v2313
  %v2315 = vsel %vm2141, %v1652, %v2314
  %v2316 = vsel %vm2143, %v1659, %v2315
  %v2317 = vsel %vm2145, %v1666, %v2316
  %v2318 = vsel %vm2147, %v1673, %v2317
  %v2319 = vsel %vm2149, %v1680, %v2318
  %v2320 = vsel %vm2137, %v1694, %v1687
  %v2321 = vsel %vm2139, %v1701, %v2320
  %v2322 = vsel %vm2141, %v1708, %v2321
  %v2323 = vsel %vm2143, %v1715, %v2322
  %v2324 = vsel %vm2145, %v1722, %v2323
  %v2325 = vsel %vm2147, %v1729, %v2324
  %v2326 = vsel %vm2149, %v1736, %v2325
  %v2327 = vsel %vm2137, %v1750, %v1743
  %v2328 = vsel %vm2139, %v1757, %v2327
  %v2329 = vsel %vm2141, %v1764, %v2328
  %v2330 = vsel %vm2143, %v1771, %v2329
  %v2331 = vsel %vm2145, %v1778, %v2330
  %v2332 = vsel %vm2147, %v1785, %v2331
  %v2333 = vsel %vm2149, %v1792, %v2332
  %v2334 = vsel %vm2137, %v1806, %v1799
  %v2335 = vsel %vm2139, %v1813, %v2334
  %v2336 = vsel %vm2141, %v1820, %v2335
  %v2337 = vsel %vm2143, %v1827, %v2336
  %v2338 = vsel %vm2145, %v1834, %v2337
  %v2339 = vsel %vm2147, %v1841, %v2338
  %v2340 = vsel %vm2149, %v1848, %v2339
  %v2341 = vsel %vm2137, %v1862, %v1855
  %v2342 = vsel %vm2139, %v1869, %v2341
  %v2343 = vsel %vm2141, %v1876, %v2342
  %v2344 = vsel %vm2143, %v1883, %v2343
  %v2345 = vsel %vm2145, %v1890, %v2344
  %v2346 = vsel %vm2147, %v1897, %v2345
  %v2347 = vsel %vm2149, %v1904, %v2346
  %v2348 = vsel %vm2137, %v1918, %v1911
  %v2349 = vsel %vm2139, %v1925, %v2348
  %v2350 = vsel %vm2141, %v1932, %v2349
  %v2351 = vsel %vm2143, %v1939, %v2350
  %v2352 = vsel %vm2145, %v1946, %v2351
  %v2353 = vsel %vm2147, %v1953, %v2352
  %v2354 = vsel %vm2149, %v1960, %v2353
  %v2355 = vsel %vm2137, %v1974, %v1967
  %v2356 = vsel %vm2139, %v1981, %v2355
  %v2357 = vsel %vm2141, %v1988, %v2356
  %v2358 = vsel %vm2143, %v1995, %v2357
  %v2359 = vsel %vm2145, %v2002, %v2358
  %v2360 = vsel %vm2147, %v2009, %v2359
  %v2361 = vsel %vm2149, %v2016, %v2360
  %v2362 = vsel %vm2137, %v2030, %v2023
  %v2363 = vsel %vm2139, %v2037, %v2362
  %v2364 = vsel %vm2141, %v2044, %v2363
  %v2365 = vsel %vm2143, %v2051, %v2364
  %v2366 = vsel %vm2145, %v2058, %v2365
  %v2367 = vsel %vm2147, %v2065, %v2366
  %v2368 = vsel %vm2149, %v2072, %v2367
  %v2369 = vsel %vm1624, %v2319, 0
  %v2371 = vsel %vm1624, %v2326, 0
  %v2373 = vsel %vm1624, %v2333, 0
  %v2375 = vsel %vm1624, %v2340, 0
  %v2377 = vsel %vm1624, %v2347, 0
  %v2379 = vsel %vm1624, %v2354, 0
  %v2381 = vsel %vm1624, %v2361, 0
  %v2383 = vsel %vm1624, %v2368, 0
  %2385 = vmatprep.subr.mxu0 0.0
  %2386 = vmatpush1.msra.mxu0 %v2232
  %2387 = vmatprep.subr.mxu0 0.0
  %2388 = vmatpush1.msra.mxu0 %v2233
  %2389 = vmatprep.subr.mxu0 0.0
  %2390 = vmatpush1.msra.mxu0 0.0
  %2391 = vmatprep.subr.mxu0 0.0
  %2392 = vmatpush1.msra.mxu0 0.0
  %2393 = vmatprep.subr.mxu0 0.0
  %2394 = vmatpush1.msra.mxu0 0.0
  %2395 = vmatprep.subr.mxu0 0.0
  %2396 = vmatpush1.msra.mxu0 0.0
  %2397 = vmatprep.subr.mxu0 0.0
  %2398 = vmatpush1.msra.mxu0 0.0
  %2399 = vmatprep.subr.mxu0 0.0
  %2400 = vmatpush1.msra.mxu0 0.0
  %2401 = vmatprep.subr.mxu0 0.0
  %2402 = vmatpush1.msra.mxu0 0.0
  %2403 = vmatprep.subr.mxu0 0.0
  %2404 = vmatpush1.msra.mxu0 0.0
  %2405 = vmatprep.subr.mxu0 0.0
  %2406 = vmatpush1.msra.mxu0 0.0
  %2407 = vmatprep.subr.mxu0 0.0
  %2408 = vmatpush1.msra.mxu0 0.0
  %2409 = vmatprep.subr.mxu0 0.0
  %2410 = vmatpush1.msra.mxu0 0.0
  %2411 = vmatprep.subr.mxu0 0.0
  %2412 = vmatpush1.msra.mxu0 0.0
  %2413 = vmatprep.subr.mxu0 0.0
  %2414 = vmatpush1.msra.mxu0 0.0
  %2415 = vmatprep.subr.mxu0 0.0
  %2416 = vmatpush1.msra.mxu0 0.0
  %2417 = vmatprep.subr.mxu0 0.0
  %2418 = vmatpush1.msra.mxu0 0.0
  %2419 = vmatprep.subr.mxu0 0.0
  %2420 = vmatpush1.msra.mxu0 0.0
  %2421 = vmatprep.subr.mxu0 0.0
  %2422 = vmatpush1.msra.mxu0 0.0
  %2423 = vmatprep.subr.mxu0 0.0
  %2424 = vmatpush1.msra.mxu0 0.0
  %2425 = vmatprep.subr.mxu0 0.0
  %2426 = vmatpush1.msra.mxu0 0.0
  %2427 = vmatprep.subr.mxu0 0.0
  %2428 = vmatpush1.msra.mxu0 0.0
  %2429 = vmatprep.subr.mxu0 0.0
  %2430 = vmatpush1.msra.mxu0 0.0
  %2431 = vmatprep.subr.mxu0 0.0
  %2432 = vmatpush1.msra.mxu0 0.0
  %2433 = vmatprep.subr.mxu0 0.0
  %2434 = vmatpush1.msra.mxu0 0.0
  %2435 = vmatprep.subr.mxu0 0.0
  %2436 = vmatpush1.msra.mxu0 0.0
  %2437 = vmatprep.subr.mxu0 0.0
  %2438 = vmatpush1.msra.mxu0 0.0
  %2439 = vmatprep.subr.mxu0 0.0
  %2440 = vmatpush1.msra.mxu0 0.0
  %2441 = vmatprep.subr.mxu0 0.0
  %2442 = vmatpush1.msra.mxu0 0.0
  %2443 = vmatprep.subr.mxu0 0.0
  %2444 = vmatpush1.msra.mxu0 0.0
  %2445 = vmatprep.subr.mxu0 0.0
  %2446 = vmatpush1.msra.mxu0 0.0
  %2447 = vmatprep.subr.mxu0 0.0
  %2448 = vmatpush1.msra.mxu0 0.0
  %2449 = vmatprep.mubr.f32.mxu0 0.0
  %2450 = vmatmul.mubr.f32.gmra.mrb[0].mxu0 %v2369
  %v2451 = vpop.f32.mrb[0].mxu0
  %v2452 = vadd.f32 %v2241, %v2451
  %v2453 = vpop.f32.mrb[0].mxu0
  %2454 = vmatprep.mubr.f32.mxu0 0.0
  %2455 = vmatmul.mubr.f32.gmra.mrb[0].mxu0 %v2371
  %v2456 = vpop.f32.mrb[0].mxu0
  %v2457 = vadd.f32 %v2242, %v2456
  %v2458 = vpop.f32.mrb[0].mxu0
  %2459 = vmatprep.mubr.f32.mxu0 0.0
  %2460 = vmatmul.mubr.f32.gmra.mrb[0].mxu0 %v2373
  %v2461 = vpop.f32.mrb[0].mxu0
  %v2462 = vadd.f32 %v2243, %v2461
  %v2463 = vpop.f32.mrb[0].mxu0
  %2464 = vmatprep.mubr.f32.mxu0 0.0
  %2465 = vmatmul.mubr.f32.gmra.mrb[0].mxu0 %v2375
  %v2466 = vpop.f32.mrb[0].mxu0
  %v2467 = vadd.f32 %v2244, %v2466
  %v2468 = vpop.f32.mrb[0].mxu0
  %2469 = vmatprep.mubr.f32.mxu0 0.0
  %2470 = vmatmul.mubr.f32.gmra.mrb[0].mxu0 %v2377
  %v2471 = vpop.f32.mrb[0].mxu0
  %v2472 = vadd.f32 %v2245, %v2471
  %v2473 = vpop.f32.mrb[0].mxu0
  %2474 = vmatprep.mubr.f32.mxu0 0.0
  %2475 = vmatmul.mubr.f32.gmra.mrb[0].mxu0 %v2379
  %v2476 = vpop.f32.mrb[0].mxu0
  %v2477 = vadd.f32 %v2246, %v2476
  %v2478 = vpop.f32.mrb[0].mxu0
  %2479 = vmatprep.mubr.f32.mxu0 0.0
  %2480 = vmatmul.mubr.f32.gmra.mrb[0].mxu0 %v2381
  %v2481 = vpop.f32.mrb[0].mxu0
  %v2482 = vadd.f32 %v2247, %v2481
  %v2483 = vpop.f32.mrb[0].mxu0
  %2484 = vmatprep.mubr.f32.mxu0 0.0
  %2485 = vmatmul.mubr.f32.gmra.mrb[0].mxu0 %v2383
  %v2486 = vpop.f32.mrb[0].mxu0
  %v2487 = vadd.f32 %v2248, %v2486
  %v2488 = vpop.f32.mrb[0].mxu0
  %2489 = vdwg.mxu0
  %v2490 = vld [vmem:[%s4] sm:$0xff]
  %v2491 = vld [vmem:[%s4 + $0x8] sm:$0xff]
  %v2492 = vld [vmem:[%s4 + $0x10] sm:$0xff]
  %v2493 = vld [vmem:[%s4 + $0x18] sm:$0xff]
  %v2494 = vld [vmem:[%s5] sm:$0x1]
  %v2496 = vlaneseq
  %v2497 = vshrl.u32 %v2496, 7
  %v2498 = vsub.s32 0, %v2497
  %v2499 = vrot.slane %v2494, %v2498
  %vm2501 = vcmask 261120
  %v2503 = vsel %vm2501, %v2452, 0
  %v2506 = vsel %vm2501, %v2457, 0
  %v2509 = vsel %vm2501, %v2462, 0
  %v2512 = vsel %vm2501, %v2467, 0
  %v2515 = vsel %vm2501, %v2472, 0
  %v2518 = vsel %vm2501, %v2477, 0
  %v2521 = vsel %vm2501, %v2482, 0
  %v2524 = vsel %vm2501, %v2487, 0
  %2526 = vmatprep.subr.mxu0 0.0
  %2527 = vmatpush1.msra.mxu0 %v2490
  %2528 = vmatprep.subr.mxu0 0.0
  %2529 = vmatpush1.msra.mxu0 %v2491
  %2530 = vmatprep.subr.mxu0 0.0
  %2531 = vmatpush1.msra.mxu0 %v2492
  %2532 = vmatprep.subr.mxu0 0.0
  %2533 = vmatpush1.msra.mxu0 %v2493
  %2534 = vmatprep.subr.mxu0 0.0
  %2535 = vmatpush1.msra.mxu0 0.0
  %2536 = vmatprep.subr.mxu0 0.0
  %2537 = vmatpush1.msra.mxu0 0.0
  %2538 = vmatprep.subr.mxu0 0.0
  %2539 = vmatpush1.msra.mxu0 0.0
  %2540 = vmatprep.subr.mxu0 0.0
  %2541 = vmatpush1.msra.mxu0 0.0
  %2542 = vmatprep.subr.mxu0 0.0
  %2543 = vmatpush1.msra.mxu0 0.0
  %2544 = vmatprep.subr.mxu0 0.0
  %2545 = vmatpush1.msra.mxu0 0.0
  %2546 = vmatprep.subr.mxu0 0.0
  %2547 = vmatpush1.msra.mxu0 0.0
  %2548 = vmatprep.subr.mxu0 0.0
  %2549 = vmatpush1.msra.mxu0 0.0
  %2550 = vmatprep.subr.mxu0 0.0
  %2551 = vmatpush1.msra.mxu0 0.0
  %2552 = vmatprep.subr.mxu0 0.0
  %2553 = vmatpush1.msra.mxu0 0.0
  %2554 = vmatprep.subr.mxu0 0.0
  %2555 = vmatpush1.msra.mxu0 0.0
  %2556 = vmatprep.subr.mxu0 0.0
  %2557 = vmatpush1.msra.mxu0 0.0
  %2558 = vmatprep.subr.mxu0 0.0
  %2559 = vmatpush1.msra.mxu0 0.0
  %2560 = vmatprep.subr.mxu0 0.0
  %2561 = vmatpush1.msra.mxu0 0.0
  %2562 = vmatprep.subr.mxu0 0.0
  %2563 = vmatpush1.msra.mxu0 0.0
  %2564 = vmatprep.subr.mxu0 0.0
  %2565 = vmatpush1.msra.mxu0 0.0
  %2566 = vmatprep.subr.mxu0 0.0
  %2567 = vmatpush1.msra.mxu0 0.0
  %2568 = vmatprep.subr.mxu0 0.0
  %2569 = vmatpush1.msra.mxu0 0.0
  %2570 = vmatprep.subr.mxu0 0.0
  %2571 = vmatpush1.msra.mxu0 0.0
  %2572 = vmatprep.subr.mxu0 0.0
  %2573 = vmatpush1.msra.mxu0 0.0
  %2574 = vmatprep.subr.mxu0 0.0
  %2575 = vmatpush1.msra.mxu0 0.0
  %2576 = vmatprep.subr.mxu0 0.0
  %2577 = vmatpush1.msra.mxu0 0.0
  %2578 = vmatprep.subr.mxu0 0.0
  %2579 = vmatpush1.msra.mxu0 0.0
  %2580 = vmatprep.subr.mxu0 0.0
  %2581 = vmatpush1.msra.mxu0 0.0
  %2582 = vmatprep.subr.mxu0 0.0
  %2583 = vmatpush1.msra.mxu0 0.0
  %2584 = vmatprep.subr.mxu0 0.0
  %2585 = vmatpush1.msra.mxu0 0.0
  %2586 = vmatprep.subr.mxu0 0.0
  %2587 = vmatpush1.msra.mxu0 0.0
  %2588 = vmatprep.subr.mxu0 0.0
  %2589 = vmatpush1.msra.mxu0 0.0
  %2590 = vmatprep.mubr.f32.mxu0 0.0
  %2591 = vmatmul.mubr.f32.gmra.mrb[0].mxu0 %v2503
  %v2592 = vpop.f32.mrb[0].mxu0
  %v2593 = vadd.f32 %v2499, %v2592
  %v2594 = vpop.f32.mrb[0].mxu0
  %2595 = vmatprep.mubr.f32.mxu0 0.0
  %2596 = vmatmul.mubr.f32.gmra.mrb[0].mxu0 %v2506
  %v2597 = vpop.f32.mrb[0].mxu0
  %v2598 = vadd.f32 %v2499, %v2597
  %v2599 = vpop.f32.mrb[0].mxu0
  %2600 = vmatprep.mubr.f32.mxu0 0.0
  %2601 = vmatmul.mubr.f32.gmra.mrb[0].mxu0 %v2509
  %v2602 = vpop.f32.mrb[0].mxu0
  %v2603 = vadd.f32 %v2499, %v2602
  %v2604 = vpop.f32.mrb[0].mxu0
  %2605 = vmatprep.mubr.f32.mxu0 0.0
  %2606 = vmatmul.mubr.f32.gmra.mrb[0].mxu0 %v2512
  %v2607 = vpop.f32.mrb[0].mxu0
  %v2608 = vadd.f32 %v2499, %v2607
  %v2609 = vpop.f32.mrb[0].mxu0
  %2610 = vmatprep.mubr.f32.mxu0 0.0
  %2611 = vmatmul.mubr.f32.gmra.mrb[0].mxu0 %v2515
  %v2612 = vpop.f32.mrb[0].mxu0
  %v2613 = vadd.f32 %v2499, %v2612
  %v2614 = vpop.f32.mrb[0].mxu0
  %2615 = vmatprep.mubr.f32.mxu0 0.0
  %2616 = vmatmul.mubr.f32.gmra.mrb[0].mxu0 %v2518
  %v2617 = vpop.f32.mrb[0].mxu0
  %v2618 = vadd.f32 %v2499, %v2617
  %v2619 = vpop.f32.mrb[0].mxu0
  %2620 = vmatprep.mubr.f32.mxu0 0.0
  %2621 = vmatmul.mubr.f32.gmra.mrb[0].mxu0 %v2521
  %v2622 = vpop.f32.mrb[0].mxu0
  %v2623 = vadd.f32 %v2499, %v2622
  %v2624 = vpop.f32.mrb[0].mxu0
  %2625 = vmatprep.mubr.f32.mxu0 0.0
  %2626 = vmatmul.mubr.f32.gmra.mrb[0].mxu0 %v2524
  %v2627 = vpop.f32.mrb[0].mxu0
  %v2628 = vadd.f32 %v2499, %v2627
  %v2629 = vpop.f32.mrb[0].mxu0
  %2630 = vdwg.mxu0
  %2631 = vst.msk [vmem:[%s6] sm:$0xff] %vm1624, %v2593
  %2632 = vst.msk [vmem:[%s6 + $0x8] sm:$0xff] %vm1624, %v2598
  %2633 = vst.msk [vmem:[%s6 + $0x10] sm:$0xff] %vm1624, %v2603
  %2634 = vst.msk [vmem:[%s6 + $0x18] sm:$0xff] %vm1624, %v2608
  %2635 = vst.msk [vmem:[%s6 + $0x20] sm:$0xff] %vm1624, %v2613
  %2636 = vst.msk [vmem:[%s6 + $0x28] sm:$0xff] %vm1624, %v2618
  %2637 = vst.msk [vmem:[%s6 + $0x30] sm:$0xff] %vm1624, %v2623
  %2638 = vst.msk [vmem:[%s6 + $0x38] sm:$0xff] %vm1624, %v2628
  // Predicated region
  $region26: #{tpu_custom_call.1} parent=0 // pred_check
    _
  $region27: #{tpu_custom_call.1} parent=0 // pred_check_branch
    %2640 = sbr.rel (0) target = $region29
  $region28: #{tpu_custom_call.1} parent=0 // pred_region
    _
  $region29: #{tpu_custom_call.1} parent=0 // pred_fallthru
    _
  // Predicated region
  $region30: #{tpu_custom_call.1} parent=0 // pred_check
    _
  $region31: #{tpu_custom_call.1} parent=0 // pred_check_branch
    %2642 = sbr.rel (0) target = $region33
  $region32: #{tpu_custom_call.1} parent=0 // pred_region
    _
  $region33: #{tpu_custom_call.1} parent=0 // pred_fallthru
    _

</llo_original>
